<compile_context>
chip_gen: v6e
topology: v6e:2x2x1
jax: 0.10.0
libtpu: 0.0.40
codegen_flags: <defaults>
</compile_context>

<pallas_src>
import jax
import jax.numpy as jnp
from jax import lax
from jax.experimental import pallas as pl
from jax.experimental.pallas import tpu as pltpu

NEG_INF = -1e30
LEAKY_SLOPE = 0.2  # PyG GATConv default negative_slope


# ----------------------------- Kernel A: projection -----------------------------
def _gat_project_kernel(x_ref, w_ref, att_src_ref, att_dst_ref,
                        h_ref, a_src_ref, a_dst_ref):
    # bf16 operands for the MXU, f32 accumulation.
    x = x_ref[...].astype(jnp.bfloat16)          # [TILE, Fin]
    w = w_ref[...].astype(jnp.bfloat16)          # [Fin, Fout]
    h = jnp.dot(x, w, preferred_element_type=jnp.float32)   # [TILE, Fout] f32

    # a_dst[i] = <h[i], att_dst>  -> VPU multiply + cross-lane reduce (no tiny-M matmul).
    a_dst_ref[...] = jnp.sum(h * att_dst_ref[...], axis=-1, keepdims=True)   # [TILE, 1]

    # a_src as a lane-dense [1, TILE] row (exact layout kernel B broadcasts from).
    a_src_ref[...] = lax.dot_general(
        att_src_ref[...], h, (((1,), (1,)), ((), ())),
        preferred_element_type=jnp.float32)                                   # [1, TILE]

    # Store h in bf16: halves its HBM traffic for the aggregation kernel.
    h_ref[...] = h.astype(jnp.bfloat16)


# ------------------- Kernel B: masked online softmax + aggregation -------------------
def _gat_attn_kernel(a_dst_ref, a_src_ref, h_ref, adj_ref, bias_ref, o_ref,
                     m_sc, l_sc, acc_sc):
    j = pl.program_id(1)

    @pl.when(j == 0)
    def _():
        m_sc[...] = jnp.full_like(m_sc, NEG_INF)
        l_sc[...] = jnp.zeros_like(l_sc)
        acc_sc[...] = jnp.zeros_like(acc_sc)

    # int8 adjacency block -> boolean mask (widen to i32 for a plain 32-bit compare).
    mask = adj_ref[...].astype(jnp.int32) != 0                 # [TI, TJ]

    # e[i, j] = leaky_relu(a_dst[i] + a_src[j]); mask non-edges.
    e = a_dst_ref[...] + a_src_ref[...]                        # [TI,1]+[1,TJ] -> [TI,TJ]
    e = jnp.where(e > 0, e, LEAKY_SLOPE * e)
    e = jnp.where(mask, e, NEG_INF)

    # Online (flash-style) softmax over the j axis.
    m_prev = m_sc[...]
    m_new = jnp.maximum(m_prev, jnp.max(e, axis=-1, keepdims=True))
    alpha = jnp.exp(m_prev - m_new)
    # Masked entries: exp(NEG_INF - m_new) underflows to 0 once m_new holds a real
    # logit. For rows whose blocks so far were all masked, the bogus exp(0)=1 terms
    # are annihilated later by alpha = exp(NEG_INF - m_real) == 0 when the block
    # containing the self-loop arrives (self-loops guarantee one exists per row),
    # so the second post-exp mask is unnecessary.
    p = jnp.exp(e - m_new)
    l_sc[...] = alpha * l_sc[...] + jnp.sum(p, axis=-1, keepdims=True)
    acc_sc[...] = alpha * acc_sc[...] + jnp.dot(
        p.astype(jnp.bfloat16), h_ref[...], preferred_element_type=jnp.float32)
    m_sc[...] = m_new

    @pl.when(j == pl.num_programs(1) - 1)
    def _():
        inv_l = pl.reciprocal(l_sc[...], approx=True)          # EUP slot, ~free
        out = acc_sc[...] * inv_l + bias_ref[...]
        o_ref[...] = jnp.maximum(out, 0.0)                     # activation = relu


# ----------------------------------- wrapper -----------------------------------
def gat_layer_pallas(x, adj, w, att_src, att_dst, bias, *, tile_i=128, tile_j=128):
    N, f_in = x.shape
    f_out = w.shape[1]
    assert N % tile_i == 0 and N % tile_j == 0

    # Pass 1: per-node projection + attention scalars (row-tiled, parallel).
    h, a_src, a_dst = pl.pallas_call(
        _gat_project_kernel,
        out_shape=(
            jax.ShapeDtypeStruct((N, f_out), jnp.bfloat16),   # h
            jax.ShapeDtypeStruct((1, N), jnp.float32),        # a_src (row)
            jax.ShapeDtypeStruct((N, 1), jnp.float32),        # a_dst (column)
        ),
        grid=(N // tile_i,),
        in_specs=[
            pl.BlockSpec((tile_i, f_in), lambda i: (i, 0)),
            pl.BlockSpec((f_in, f_out), lambda i: (0, 0)),
            pl.BlockSpec((1, f_out), lambda i: (0, 0)),
            pl.BlockSpec((1, f_out), lambda i: (0, 0)),
        ],
        out_specs=(
            pl.BlockSpec((tile_i, f_out), lambda i: (i, 0)),
            pl.BlockSpec((1, tile_i), lambda i: (0, i)),
            pl.BlockSpec((tile_i, 1), lambda i: (i, 0)),
        ),
        compiler_params=pltpu.CompilerParams(dimension_semantics=("parallel",)),
    )(x, w, att_src, att_dst)

    # Pass 2: tiled masked softmax + attention-weighted aggregation.
    out = pl.pallas_call(
        _gat_attn_kernel,
        out_shape=jax.ShapeDtypeStruct((N, f_out), jnp.float32),
        grid=(N // tile_i, N // tile_j),
        in_specs=[
            pl.BlockSpec((tile_i, 1), lambda i, j: (i, 0)),        # a_dst
            pl.BlockSpec((1, tile_j), lambda i, j: (0, j)),        # a_src
            pl.BlockSpec((tile_j, f_out), lambda i, j: (j, 0)),    # h (bf16)
            pl.BlockSpec((tile_i, tile_j), lambda i, j: (i, j)),   # adj (int8)
            pl.BlockSpec((1, f_out), lambda i, j: (0, 0)),         # bias
        ],
        out_specs=pl.BlockSpec((tile_i, f_out), lambda i, j: (i, 0)),
        scratch_shapes=[
            pltpu.VMEM((tile_i, 1), jnp.float32),       # m (running max)
            pltpu.VMEM((tile_i, 1), jnp.float32),       # l (running denom)
            pltpu.VMEM((tile_i, f_out), jnp.float32),   # acc
        ],
        compiler_params=pltpu.CompilerParams(
            dimension_semantics=("parallel", "arbitrary")),
    )(a_dst, a_src, h, adj, bias)
    return out


# --------------------------------- JAX glue / ref ---------------------------------
def build_adjacency(edge_index, num_nodes):
    """Dense int8 mask: adj[i, j] = 1 iff message j -> i exists; self loops added."""
    src, dst = edge_index[0], edge_index[1]
    adj = jnp.zeros((num_nodes, num_nodes), jnp.int8)
    adj = adj.at[dst, src].set(1)
    adj = jnp.maximum(adj, jnp.eye(num_nodes, dtype=jnp.int8))  # add_self_loops=True
    return adj


def gat_reference(x, adj, w, att_src, att_dst, bias):
    """Pure-JAX f32 reference for the same forward pass."""
    h = x @ w
    a_src = h @ att_src[0]
    a_dst = h @ att_dst[0]
    e = a_dst[:, None] + a_src[None, :]
    e = jnp.where(e > 0, e, LEAKY_SLOPE * e)
    e = jnp.where(adj != 0, e, -jnp.inf)
    attn = jax.nn.softmax(e, axis=-1)
    return jnp.maximum(attn @ h + bias, 0.0)


def glorot(key, shape):
    fan_in, fan_out = shape[0], shape[-1]
    limit = (6.0 / (fan_in + fan_out)) ** 0.5
    return jax.random.uniform(key, shape, jnp.float32, -limit, limit)


if __name__ == "__main__":
    N = 256        # nodes (2x2 tile grid -> exercises the online softmax)
    F_IN = 16      # in_features
    F_OUT = 32     # out_features (note: <128 lanes; fuse/pad heads for wide configs)
    HEADS = 1      # heads

    key = jax.random.PRNGKey(0)
    k_x, k_w, k_as, k_ad = jax.random.split(key, 4)

    # Node features
    x = jax.random.normal(k_x, (N, F_IN), jnp.float32)

    # Deterministic edge list: each node i receives from (i+1)%N, (i+3)%N, (i+7)%N.
    dst = jnp.tile(jnp.arange(N), 3)
    src = jnp.concatenate([(jnp.arange(N) + s) % N for s in (1, 3, 7)])
    edge_index = jnp.stack([src, dst], axis=0)  # [2, E]
    adj = build_adjacency(edge_index, N)

    # Deterministic GATConv parameters (heads=1, concat=True)
    w = glorot(k_w, (F_IN, HEADS * F_OUT))
    att_src = glorot(k_as, (1, HEADS * F_OUT))
    att_dst = glorot(k_ad, (1, HEADS * F_OUT))
    bias = jnp.zeros((1, HEADS * F_OUT), jnp.float32)

    run = jax.jit(gat_layer_pallas)
    out = run(x, adj, w, att_src, att_dst, bias)
    jax.block_until_ready(out)

    ref = gat_reference(x, adj, w, att_src, att_dst, bias)
    assert out.shape == (N, HEADS * F_OUT) and out.dtype == jnp.float32
    assert bool(jnp.allclose(out, ref, atol=1e-1, rtol=1e-1)), (
        f"max abs err {float(jnp.max(jnp.abs(out - ref)))}")
    print("KERNEL_OK")
</pallas_src>

<mosaic_0001>
module attributes {stable_mosaic.version = 11 : i64} {
  func.func @_gat_attn_kernel(%arg0: i32, %arg1: i32, %arg2: memref<128x1xf32, #tpu.memory_space<vmem>>, %arg3: memref<1x128xf32, #tpu.memory_space<vmem>>, %arg4: memref<128x32xbf16, #tpu.memory_space<vmem>>, %arg5: memref<128x128xi8, #tpu.memory_space<vmem>>, %arg6: memref<1x32xf32, #tpu.memory_space<vmem>>, %arg7: memref<128x32xf32, #tpu.memory_space<vmem>>, %arg8: memref<128x1xf32, #tpu.memory_space<vmem>>, %arg9: memref<128x1xf32, #tpu.memory_space<vmem>>, %arg10: memref<128x32xf32, #tpu.memory_space<vmem>>) attributes {dimension_semantics = [#tpu.dimension_semantics<parallel>, #tpu.dimension_semantics<arbitrary>], iteration_bounds = array<i64: 2, 2>, scalar_prefetch = 0 : i64, scratch_operands = 3 : i64, tpu.core_type = #tpu.core_type<tc>, window_params = [{transform_indices = @transform_0, window_bounds = array<i64: 128, 1>}, {transform_indices = @transform_1, window_bounds = array<i64: 1, 128>}, {transform_indices = @transform_2, window_bounds = array<i64: 128, 32>}, {transform_indices = @transform_3, window_bounds = array<i64: 128, 128>}, {pipeline_mode = #tpu.pipeline_mode<synchronous>, transform_indices = @transform_4, window_bounds = array<i64: 1, 32>}, {transform_indices = @transform_5, window_bounds = array<i64: 128, 32>}]} {
    %c0_i32 = arith.constant 0 : i32
    %0 = arith.cmpi eq, %arg1, %c0_i32 : i32
    %1 = arith.extui %0 : i1 to i32
    %c0_i32_0 = arith.constant 0 : i32
    %2 = arith.cmpi ne, %1, %c0_i32_0 : i32
    scf.if %2 {
      %cst_27 = arith.constant -1.000000e+30 : f32
      %46 = vector.broadcast %cst_27 : f32 to vector<128x1xf32>
      %c0_28 = arith.constant 0 : index
      %c0_29 = arith.constant 0 : index
      %47 = vector.load %arg8[%c0_28, %c0_29] : memref<128x1xf32, #tpu.memory_space<vmem>>, vector<128x1xf32>
      tpu.vector_store %arg8[%c0_28, %c0_29], %46 {strides = array<i32>} : memref<128x1xf32, #tpu.memory_space<vmem>>, vector<128x1xf32>,
      %cst_30 = arith.constant 0.000000e+00 : f32
      %48 = vector.broadcast %cst_30 : f32 to vector<128x1xf32>
      %c0_31 = arith.constant 0 : index
      %c0_32 = arith.constant 0 : index
      %49 = vector.load %arg9[%c0_31, %c0_32] : memref<128x1xf32, #tpu.memory_space<vmem>>, vector<128x1xf32>
      tpu.vector_store %arg9[%c0_31, %c0_32], %48 {strides = array<i32>} : memref<128x1xf32, #tpu.memory_space<vmem>>, vector<128x1xf32>,
      %cst_33 = arith.constant 0.000000e+00 : f32
      %50 = vector.broadcast %cst_33 : f32 to vector<128x32xf32>
      %c0_34 = arith.constant 0 : index
      %c0_35 = arith.constant 0 : index
      %51 = vector.load %arg10[%c0_34, %c0_35] : memref<128x32xf32, #tpu.memory_space<vmem>>, vector<128x32xf32>
      tpu.vector_store %arg10[%c0_34, %c0_35], %50 {strides = array<i32>} : memref<128x32xf32, #tpu.memory_space<vmem>>, vector<128x32xf32>,
    } else {
    }
    %c0 = arith.constant 0 : index
    %c0_1 = arith.constant 0 : index
    %3 = vector.load %arg5[%c0, %c0_1] : memref<128x128xi8, #tpu.memory_space<vmem>>, vector<128x128xi8>
    %4 = arith.extsi %3 : vector<128x128xi8> to vector<128x128xi32>
    %c0_i32_2 = arith.constant 0 : i32
    %5 = vector.broadcast %c0_i32_2 : i32 to vector<128x128xi32>
    %6 = arith.cmpi ne, %4, %5 : vector<128x128xi32>
    %c0_3 = arith.constant 0 : index
    %c0_4 = arith.constant 0 : index
    %7 = vector.load %arg2[%c0_3, %c0_4] : memref<128x1xf32, #tpu.memory_space<vmem>>, vector<128x1xf32>
    %c0_5 = arith.constant 0 : index
    %c0_6 = arith.constant 0 : index
    %8 = vector.load %arg3[%c0_5, %c0_6] : memref<1x128xf32, #tpu.memory_space<vmem>>, vector<1x128xf32>
    %9 = vector.broadcast %7 : vector<128x1xf32> to vector<128x128xf32>
    %10 = vector.broadcast %8 : vector<1x128xf32> to vector<128x128xf32>
    %11 = arith.addf %9, %10 : vector<128x128xf32>
    %cst = arith.constant 0.000000e+00 : f32
    %12 = vector.broadcast %cst : f32 to vector<128x128xf32>
    %13 = arith.cmpf ogt, %11, %12 : vector<128x128xf32>
    %cst_7 = arith.constant 2.000000e-01 : f32
    %14 = vector.broadcast %cst_7 : f32 to vector<128x128xf32>
    %15 = arith.mulf %14, %11 : vector<128x128xf32>
    %16 = arith.select %13, %11, %15 : vector<128x128xi1>, vector<128x128xf32>
    %cst_8 = arith.constant -1.000000e+30 : f32
    %17 = vector.broadcast %cst_8 : f32 to vector<128x128xf32>
    %18 = arith.select %6, %16, %17 : vector<128x128xi1>, vector<128x128xf32>
    %c0_9 = arith.constant 0 : index
    %c0_10 = arith.constant 0 : index
    %19 = vector.load %arg8[%c0_9, %c0_10] : memref<128x1xf32, #tpu.memory_space<vmem>>, vector<128x1xf32>
    %cst_11 = arith.constant dense<0xFF800000> : vector<128xf32>
    %20 = vector.multi_reduction <maximumf>, %18, %cst_11 [1] : vector<128x128xf32> to vector<128xf32>
    %21 = vector.shape_cast %20 : vector<128xf32> to vector<128x1xf32>
    %22 = arith.maximumf %19, %21 : vector<128x1xf32>
    %23 = arith.subf %19, %22 : vector<128x1xf32>
    %24 = math.exp %23 : vector<128x1xf32>
    %25 = vector.broadcast %22 : vector<128x1xf32> to vector<128x128xf32>
    %26 = arith.subf %18, %25 : vector<128x128xf32>
    %27 = math.exp %26 : vector<128x128xf32>
    %c0_12 = arith.constant 0 : index
    %c0_13 = arith.constant 0 : index
    %28 = vector.load %arg9[%c0_12, %c0_13] : memref<128x1xf32, #tpu.memory_space<vmem>>, vector<128x1xf32>
    %29 = arith.mulf %24, %28 : vector<128x1xf32>
    %cst_14 = arith.constant dense<0.000000e+00> : vector<128xf32>
    %30 = vector.multi_reduction <add>, %27, %cst_14 [1] : vector<128x128xf32> to vector<128xf32>
    %31 = vector.shape_cast %30 : vector<128xf32> to vector<128x1xf32>
    %32 = arith.addf %29, %31 : vector<128x1xf32>
    %c0_15 = arith.constant 0 : index
    %c0_16 = arith.constant 0 : index
    %33 = vector.load %arg9[%c0_15, %c0_16] : memref<128x1xf32, #tpu.memory_space<vmem>>, vector<128x1xf32>
    tpu.vector_store %arg9[%c0_15, %c0_16], %32 {strides = array<i32>} : memref<128x1xf32, #tpu.memory_space<vmem>>, vector<128x1xf32>,
    %c0_17 = arith.constant 0 : index
    %c0_18 = arith.constant 0 : index
    %34 = vector.load %arg10[%c0_17, %c0_18] : memref<128x32xf32, #tpu.memory_space<vmem>>, vector<128x32xf32>
    %35 = vector.broadcast %24 : vector<128x1xf32> to vector<128x32xf32>
    %36 = arith.mulf %35, %34 : vector<128x32xf32>
    %37 = arith.truncf %27 : vector<128x128xf32> to vector<128x128xbf16>
    %c0_19 = arith.constant 0 : index
    %c0_20 = arith.constant 0 : index
    %38 = vector.load %arg4[%c0_19, %c0_20] : memref<128x32xbf16, #tpu.memory_space<vmem>>, vector<128x32xbf16>
    %cst_21 = arith.constant dense<0.000000e+00> : vector<128x32xf32>
    %39 = tpu.matmul %37, %38, %cst_21 {dimension_numbers = #tpu.dot_dimension_numbers<[1], [0], [0], [1], [0, 0, 1, 1], [], []>} : vector<128x128xbf16>, vector<128x32xbf16>, vector<128x32xf32> -> vector<128x32xf32>
    %40 = arith.addf %36, %39 : vector<128x32xf32>
    %c0_22 = arith.constant 0 : index
    %c0_23 = arith.constant 0 : index
    %41 = vector.load %arg10[%c0_22, %c0_23] : memref<128x32xf32, #tpu.memory_space<vmem>>, vector<128x32xf32>
    tpu.vector_store %arg10[%c0_22, %c0_23], %40 {strides = array<i32>} : memref<128x32xf32, #tpu.memory_space<vmem>>, vector<128x32xf32>,
    %c0_24 = arith.constant 0 : index
    %c0_25 = arith.constant 0 : index
    %42 = vector.load %arg8[%c0_24, %c0_25] : memref<128x1xf32, #tpu.memory_space<vmem>>, vector<128x1xf32>
    tpu.vector_store %arg8[%c0_24, %c0_25], %22 {strides = array<i32>} : memref<128x1xf32, #tpu.memory_space<vmem>>, vector<128x1xf32>,
    %c1_i32 = arith.constant 1 : i32
    %43 = arith.cmpi eq, %arg1, %c1_i32 : i32
    %44 = arith.extui %43 : i1 to i32
    %c0_i32_26 = arith.constant 0 : i32
    %45 = arith.cmpi ne, %44, %c0_i32_26 : i32
    scf.if %45 {
      %c0_27 = arith.constant 0 : index
      %c0_28 = arith.constant 0 : index
      %46 = vector.load %arg9[%c0_27, %c0_28] : memref<128x1xf32, #tpu.memory_space<vmem>>, vector<128x1xf32>
      %47 = tpu.reciprocal %46 {approx = true} : vector<128x1xf32> -> vector<128x1xf32>
      %c0_29 = arith.constant 0 : index
      %c0_30 = arith.constant 0 : index
      %48 = vector.load %arg10[%c0_29, %c0_30] : memref<128x32xf32, #tpu.memory_space<vmem>>, vector<128x32xf32>
      %49 = vector.broadcast %47 : vector<128x1xf32> to vector<128x32xf32>
      %50 = arith.mulf %48, %49 : vector<128x32xf32>
      %c0_31 = arith.constant 0 : index
      %c0_32 = arith.constant 0 : index
      %51 = vector.load %arg6[%c0_31, %c0_32] : memref<1x32xf32, #tpu.memory_space<vmem>>, vector<1x32xf32>
      %52 = vector.broadcast %51 : vector<1x32xf32> to vector<128x32xf32>
      %53 = arith.addf %50, %52 : vector<128x32xf32>
      %cst_33 = arith.constant 0.000000e+00 : f32
      %54 = vector.broadcast %cst_33 : f32 to vector<128x32xf32>
      %55 = arith.maximumf %53, %54 : vector<128x32xf32>
      %c0_34 = arith.constant 0 : index
      %c0_35 = arith.constant 0 : index
      %56 = vector.load %arg7[%c0_34, %c0_35] : memref<128x32xf32, #tpu.memory_space<vmem>>, vector<128x32xf32>
      tpu.vector_store %arg7[%c0_34, %c0_35], %55 {strides = array<i32>} : memref<128x32xf32, #tpu.memory_space<vmem>>, vector<128x32xf32>,
    } else {
    }
    return
  }
  func.func @transform_0(%arg0: i32, %arg1: i32) -> (i32, i32) {
    %c0_i32 = arith.constant 0 : i32
    %c0_i32_0 = arith.constant 0 : i32
    return %arg0, %c0_i32 : i32, i32
  }
  func.func @transform_1(%arg0: i32, %arg1: i32) -> (i32, i32) {
    %c0_i32 = arith.constant 0 : i32
    %c0_i32_0 = arith.constant 0 : i32
    return %c0_i32, %arg1 : i32, i32
  }
  func.func @transform_2(%arg0: i32, %arg1: i32) -> (i32, i32) {
    %c0_i32 = arith.constant 0 : i32
    %c0_i32_0 = arith.constant 0 : i32
    return %arg1, %c0_i32 : i32, i32
  }
  func.func @transform_3(%arg0: i32, %arg1: i32) -> (i32, i32) {
    %c0_i32 = arith.constant 0 : i32
    return %arg0, %arg1 : i32, i32
  }
  func.func @transform_4(%arg0: i32, %arg1: i32) -> (i32, i32) {
    %c0_i32 = arith.constant 0 : i32
    %c0_i32_0 = arith.constant 0 : i32
    %c0_i32_1 = arith.constant 0 : i32
    return %c0_i32, %c0_i32_0 : i32, i32
  }
  func.func @transform_5(%arg0: i32, %arg1: i32) -> (i32, i32) {
    %c0_i32 = arith.constant 0 : i32
    %c0_i32_0 = arith.constant 0 : i32
    return %arg0, %c0_i32 : i32, i32
  }
}

module attributes {stable_mosaic.version = 11 : i64} {
  func.func @_gat_project_kernel(%arg0: i32, %arg1: memref<128x16xf32, #tpu.memory_space<vmem>>, %arg2: memref<16x32xf32, #tpu.memory_space<vmem>>, %arg3: memref<1x32xf32, #tpu.memory_space<vmem>>, %arg4: memref<1x32xf32, #tpu.memory_space<vmem>>, %arg5: memref<128x32xbf16, #tpu.memory_space<vmem>>, %arg6: memref<1x128xf32, #tpu.memory_space<vmem>>, %arg7: memref<128x1xf32, #tpu.memory_space<vmem>>) attributes {dimension_semantics = [#tpu.dimension_semantics<parallel>], iteration_bounds = array<i64: 2>, scalar_prefetch = 0 : i64, scratch_operands = 0 : i64, tpu.core_type = #tpu.core_type<tc>, window_params = [{transform_indices = @transform_0, window_bounds = array<i64: 128, 16>}, {pipeline_mode = #tpu.pipeline_mode<synchronous>, transform_indices = @transform_1, window_bounds = array<i64: 16, 32>}, {pipeline_mode = #tpu.pipeline_mode<synchronous>, transform_indices = @transform_2, window_bounds = array<i64: 1, 32>}, {pipeline_mode = #tpu.pipeline_mode<synchronous>, transform_indices = @transform_3, window_bounds = array<i64: 1, 32>}, {transform_indices = @transform_4, window_bounds = array<i64: 128, 32>}, {transform_indices = @transform_5, window_bounds = array<i64: 1, 128>}, {transform_indices = @transform_6, window_bounds = array<i64: 128, 1>}]} {
    %c0 = arith.constant 0 : index
    %c0_0 = arith.constant 0 : index
    %0 = vector.load %arg1[%c0, %c0_0] : memref<128x16xf32, #tpu.memory_space<vmem>>, vector<128x16xf32>
    %1 = arith.truncf %0 : vector<128x16xf32> to vector<128x16xbf16>
    %c0_1 = arith.constant 0 : index
    %c0_2 = arith.constant 0 : index
    %2 = vector.load %arg2[%c0_1, %c0_2] : memref<16x32xf32, #tpu.memory_space<vmem>>, vector<16x32xf32>
    %3 = arith.truncf %2 : vector<16x32xf32> to vector<16x32xbf16>
    %cst = arith.constant dense<0.000000e+00> : vector<128x32xf32>
    %4 = tpu.matmul %1, %3, %cst {dimension_numbers = #tpu.dot_dimension_numbers<[1], [0], [0], [1], [0, 0, 1, 1], [], []>} : vector<128x16xbf16>, vector<16x32xbf16>, vector<128x32xf32> -> vector<128x32xf32>
    %c0_3 = arith.constant 0 : index
    %c0_4 = arith.constant 0 : index
    %5 = vector.load %arg4[%c0_3, %c0_4] : memref<1x32xf32, #tpu.memory_space<vmem>>, vector<1x32xf32>
    %6 = vector.broadcast %5 : vector<1x32xf32> to vector<128x32xf32>
    %7 = arith.mulf %4, %6 : vector<128x32xf32>
    %cst_5 = arith.constant dense<0.000000e+00> : vector<128xf32>
    %8 = vector.multi_reduction <add>, %7, %cst_5 [1] : vector<128x32xf32> to vector<128xf32>
    %9 = vector.shape_cast %8 : vector<128xf32> to vector<128x1xf32>
    %c0_6 = arith.constant 0 : index
    %c0_7 = arith.constant 0 : index
    %10 = vector.load %arg7[%c0_6, %c0_7] : memref<128x1xf32, #tpu.memory_space<vmem>>, vector<128x1xf32>
    tpu.vector_store %arg7[%c0_6, %c0_7], %9 {strides = array<i32>} : memref<128x1xf32, #tpu.memory_space<vmem>>, vector<128x1xf32>,
    %c0_8 = arith.constant 0 : index
    %c0_9 = arith.constant 0 : index
    %11 = vector.load %arg3[%c0_8, %c0_9] : memref<1x32xf32, #tpu.memory_space<vmem>>, vector<1x32xf32>
    %cst_10 = arith.constant dense<0.000000e+00> : vector<1x128xf32>
    %12 = tpu.matmul %11, %4, %cst_10 {dimension_numbers = #tpu.dot_dimension_numbers<[1], [1], [0], [0], [0, 0, 1, 0], [], []>} : vector<1x32xf32>, vector<128x32xf32>, vector<1x128xf32> -> vector<1x128xf32>
    %c0_11 = arith.constant 0 : index
    %c0_12 = arith.constant 0 : index
    %13 = vector.load %arg6[%c0_11, %c0_12] : memref<1x128xf32, #tpu.memory_space<vmem>>, vector<1x128xf32>
    tpu.vector_store %arg6[%c0_11, %c0_12], %12 {strides = array<i32>} : memref<1x128xf32, #tpu.memory_space<vmem>>, vector<1x128xf32>,
    %14 = arith.truncf %4 : vector<128x32xf32> to vector<128x32xbf16>
    %c0_13 = arith.constant 0 : index
    %c0_14 = arith.constant 0 : index
    %15 = vector.load %arg5[%c0_13, %c0_14] : memref<128x32xbf16, #tpu.memory_space<vmem>>, vector<128x32xbf16>
    tpu.vector_store %arg5[%c0_13, %c0_14], %14 {strides = array<i32>} : memref<128x32xbf16, #tpu.memory_space<vmem>>, vector<128x32xbf16>,
    return
  }
  func.func @transform_0(%arg0: i32) -> (i32, i32) {
    %c0_i32 = arith.constant 0 : i32
    %c0_i32_0 = arith.constant 0 : i32
    return %arg0, %c0_i32 : i32, i32
  }
  func.func @transform_1(%arg0: i32) -> (i32, i32) {
    %c0_i32 = arith.constant 0 : i32
    %c0_i32_0 = arith.constant 0 : i32
    %c0_i32_1 = arith.constant 0 : i32
    return %c0_i32, %c0_i32_0 : i32, i32
  }
  func.func @transform_2(%arg0: i32) -> (i32, i32) {
    %c0_i32 = arith.constant 0 : i32
    %c0_i32_0 = arith.constant 0 : i32
    %c0_i32_1 = arith.constant 0 : i32
    return %c0_i32, %c0_i32_0 : i32, i32
  }
  func.func @transform_3(%arg0: i32) -> (i32, i32) {
    %c0_i32 = arith.constant 0 : i32
    %c0_i32_0 = arith.constant 0 : i32
    %c0_i32_1 = arith.constant 0 : i32
    return %c0_i32, %c0_i32_0 : i32, i32
  }
  func.func @transform_4(%arg0: i32) -> (i32, i32) {
    %c0_i32 = arith.constant 0 : i32
    %c0_i32_0 = arith.constant 0 : i32
    return %arg0, %c0_i32 : i32, i32
  }
  func.func @transform_5(%arg0: i32) -> (i32, i32) {
    %c0_i32 = arith.constant 0 : i32
    %c0_i32_0 = arith.constant 0 : i32
    return %c0_i32, %arg0 : i32, i32
  }
  func.func @transform_6(%arg0: i32) -> (i32, i32) {
    %c0_i32 = arith.constant 0 : i32
    %c0_i32_0 = arith.constant 0 : i32
    return %arg0, %c0_i32 : i32, i32
  }
}

</mosaic_0001>

<llo_original>
// kernel: gat_layer_pallas.2
$region0: #{gat_layer_pallas.2}
  #allocation0 [shape = 'u32[]', space=smem, size = 0x4, offset = 0x4, fixed_abs, tag = 'smem constant byte address 0x4 - core index']
  #allocation1 [shape = 'u32[144,128]{1,0:T(1,128)}', space=vmem, size = 0x12000, scoped, tag = 'internal scratch']
  %s0 = inlined_call_operand.vmem [shape: f32[256,16], index: 0, kind: input, shape index: {}]
  %s1 = inlined_call_operand.vmem [shape: f32[16,32], index: 1, kind: input, shape index: {}]
  %s2 = inlined_call_operand.vmem [shape: f32[1,32], index: 2, kind: input, shape index: {}]
  %s3 = inlined_call_operand.vmem [shape: f32[1,32], index: 3, kind: input, shape index: {}]
  %s4 = inlined_call_operand.vmem [shape: bf16[256,32], index: 4, kind: output, shape index: {0}]
  %s5 = inlined_call_operand.vmem [shape: f32[1,256], index: 5, kind: output, shape index: {1}]
  %s6 = inlined_call_operand.vmem [shape: f32[256,1], index: 6, kind: output, shape index: {2}]
  %7 = xla_tuple %s4, %s5, %s6
  %s8 = sld [smem:[#allocation0]]
  $region65: #{gat_layer_pallas.2} parent=0
    _
  %s10 = ssub.s32 1, %s8
  %s11 = scalar_select 0, %s10, %s8
  loop: start=0, step=1, limit=4
  $region2: #{gat_layer_pallas.2} parent=0 // loop_pre_header
    _
  $region3: #{gat_layer_pallas.2} parent=0 // loop_header
    %s13 = sphi 0, %s17
    %p14 = scmp.ge.s32.totalorder %s13, 4
    %s23 = sphi 0, %s25
    %s26 = sphi 0, %s23
    %s27 = sphi 0, %s26
    %s43 = sphi 0, %s27
    %s47 = sphi 0, %s47
    %s49 = sphi 0, %s47
    %s50 = sphi 0, %s49
    %s64 = sphi 0, %s50
    %s68 = sphi 0, %s68
    %s70 = sphi 0, %s68
    %s71 = sphi 0, %s70
    %s85 = sphi 0, %s71
    %s89 = sphi 0, %s89
    %s91 = sphi 0, %s89
    %s92 = sphi 0, %s91
    %s106 = sphi 0, %s92
    %s112 = sphi 0, %s114
    %s115 = sphi 0, %s112
    %s116 = sphi 0, %s115
    %s132 = sphi 0, %s116
    %s138 = sphi 0, %s140
    %s141 = sphi 0, %s138
    %s142 = sphi 0, %s141
    %s158 = sphi 0, %s142
    %s164 = sphi 0, %s166
    %s167 = sphi 0, %s164
    %s168 = sphi 0, %s167
    %s184 = sphi 0, %s168
  $region4: #{gat_layer_pallas.2} parent=0 // loop_header_branch
    %16 = sbr.rel (%p14) target = $region8
  $region5: #{gat_layer_pallas.2} parent=0 // loop_body
    %s18 = ssub.s32 %s13, 1
    %s19 = ssub.s32 %s13, 2
    %s20 = sadd.s32 %s13, 1
    %s21 = ssub.s32 %s13, %s20
    %p22 = scmp.eq.s32.totalorder %s21, 0
    %s24 = sadd.s32 %s23, 1
    %s25 = scalar_select %p22, %s23, %s24
    %p28 = pneg %p22
    %p29 = scmp.eq.s32.totalorder %s13, 1
    %p30 = por %p28, %p29
    %p31 = scmp.ne.s32.totalorder %s23, %s26
    %p32 = scmp.eq.s32.totalorder %s13, 0
    %p33 = por %p31, %p32
    %p34 = scmp.ne.s32.totalorder %s23, %s26
    %p35 = scmp.eq.s32.totalorder %s18, 1
    %p36 = por %p34, %p35
    %p37 = scmp.ne.s32.totalorder %s26, %s27
    %p38 = scmp.eq.s32.totalorder %s18, 0
    %p39 = por %p37, %p38
    %p40 = scmp.ne.s32.totalorder %s26, %s27
    %p41 = scmp.eq.s32.totalorder %s19, 1
    %p42 = por %p40, %p41
    %p44 = scmp.ne.s32.totalorder %s27, %s43
    %p45 = scmp.eq.s32.totalorder %s19, 0
    %p46 = por %p44, %p45
    %s48 = sadd.s32 %s47, 1
    %p51 = scmp.eq.s32.totalorder %s13, 1
    %p52 = scmp.ne.s32.totalorder %s47, %s49
    %p53 = scmp.eq.s32.totalorder %s13, 0
    %p54 = por %p52, %p53
    %p55 = scmp.ne.s32.totalorder %s47, %s49
    %p56 = scmp.eq.s32.totalorder %s18, 1
    %p57 = por %p55, %p56
    %p58 = scmp.ne.s32.totalorder %s49, %s50
    %p59 = scmp.eq.s32.totalorder %s18, 0
    %p60 = por %p58, %p59
    %p61 = scmp.ne.s32.totalorder %s49, %s50
    %p62 = scmp.eq.s32.totalorder %s19, 1
    %p63 = por %p61, %p62
    %p65 = scmp.ne.s32.totalorder %s50, %s64
    %p66 = scmp.eq.s32.totalorder %s19, 0
    %p67 = por %p65, %p66
    %s69 = sadd.s32 %s68, 1
    %p72 = scmp.eq.s32.totalorder %s13, 1
    %p73 = scmp.ne.s32.totalorder %s68, %s70
    %p74 = scmp.eq.s32.totalorder %s13, 0
    %p75 = por %p73, %p74
    %p76 = scmp.ne.s32.totalorder %s68, %s70
    %p77 = scmp.eq.s32.totalorder %s18, 1
    %p78 = por %p76, %p77
    %p79 = scmp.ne.s32.totalorder %s70, %s71
    %p80 = scmp.eq.s32.totalorder %s18, 0
    %p81 = por %p79, %p80
    %p82 = scmp.ne.s32.totalorder %s70, %s71
    %p83 = scmp.eq.s32.totalorder %s19, 1
    %p84 = por %p82, %p83
    %p86 = scmp.ne.s32.totalorder %s71, %s85
    %p87 = scmp.eq.s32.totalorder %s19, 0
    %p88 = por %p86, %p87
    %s90 = sadd.s32 %s89, 1
    %p93 = scmp.eq.s32.totalorder %s13, 1
    %p94 = scmp.ne.s32.totalorder %s89, %s91
    %p95 = scmp.eq.s32.totalorder %s13, 0
    %p96 = por %p94, %p95
    %p97 = scmp.ne.s32.totalorder %s89, %s91
    %p98 = scmp.eq.s32.totalorder %s18, 1
    %p99 = por %p97, %p98
    %p100 = scmp.ne.s32.totalorder %s91, %s92
    %p101 = scmp.eq.s32.totalorder %s18, 0
    %p102 = por %p100, %p101
    %p103 = scmp.ne.s32.totalorder %s91, %s92
    %p104 = scmp.eq.s32.totalorder %s19, 1
    %p105 = por %p103, %p104
    %p107 = scmp.ne.s32.totalorder %s92, %s106
    %p108 = scmp.eq.s32.totalorder %s19, 0
    %p109 = por %p107, %p108
    %s110 = ssub.s32 %s13, %s20
    %p111 = scmp.eq.s32.totalorder %s110, 0
    %s113 = sadd.s32 %s112, 1
    %s114 = scalar_select %p111, %s112, %s113
    %p117 = pneg %p111
    %p118 = scmp.eq.s32.totalorder %s13, 1
    %p119 = por %p117, %p118
    %p120 = scmp.ne.s32.totalorder %s112, %s115
    %p121 = scmp.eq.s32.totalorder %s13, 0
    %p122 = por %p120, %p121
    %p123 = scmp.ne.s32.totalorder %s112, %s115
    %p124 = scmp.eq.s32.totalorder %s18, 1
    %p125 = por %p123, %p124
    %p126 = scmp.ne.s32.totalorder %s115, %s116
    %p127 = scmp.eq.s32.totalorder %s18, 0
    %p128 = por %p126, %p127
    %p129 = scmp.ne.s32.totalorder %s115, %s116
    %p130 = scmp.eq.s32.totalorder %s19, 1
    %p131 = por %p129, %p130
    %p133 = scmp.ne.s32.totalorder %s116, %s132
    %p134 = scmp.eq.s32.totalorder %s19, 0
    %p135 = por %p133, %p134
    %s136 = ssub.s32 %s13, %s20
    %p137 = scmp.eq.s32.totalorder %s136, 0
    %s139 = sadd.s32 %s138, 1
    %s140 = scalar_select %p137, %s138, %s139
    %p143 = pneg %p137
    %p144 = scmp.eq.s32.totalorder %s13, 1
    %p145 = por %p143, %p144
    %p146 = scmp.ne.s32.totalorder %s138, %s141
    %p147 = scmp.eq.s32.totalorder %s13, 0
    %p148 = por %p146, %p147
    %p149 = scmp.ne.s32.totalorder %s138, %s141
    %p150 = scmp.eq.s32.totalorder %s18, 1
    %p151 = por %p149, %p150
    %p152 = scmp.ne.s32.totalorder %s141, %s142
    %p153 = scmp.eq.s32.totalorder %s18, 0
    %p154 = por %p152, %p153
    %p155 = scmp.ne.s32.totalorder %s141, %s142
    %p156 = scmp.eq.s32.totalorder %s19, 1
    %p157 = por %p155, %p156
    %p159 = scmp.ne.s32.totalorder %s142, %s158
    %p160 = scmp.eq.s32.totalorder %s19, 0
    %p161 = por %p159, %p160
    %s162 = ssub.s32 %s13, %s20
    %p163 = scmp.eq.s32.totalorder %s162, 0
    %s165 = sadd.s32 %s164, 1
    %s166 = scalar_select %p163, %s164, %s165
    %p169 = pneg %p163
    %p170 = scmp.eq.s32.totalorder %s13, 1
    %p171 = por %p169, %p170
    %p172 = scmp.ne.s32.totalorder %s164, %s167
    %p173 = scmp.eq.s32.totalorder %s13, 0
    %p174 = por %p172, %p173
    %p175 = scmp.ne.s32.totalorder %s164, %s167
    %p176 = scmp.eq.s32.totalorder %s18, 1
    %p177 = por %p175, %p176
    %p178 = scmp.ne.s32.totalorder %s167, %s168
    %p179 = scmp.eq.s32.totalorder %s18, 0
    %p180 = por %p178, %p179
    %p181 = scmp.ne.s32.totalorder %s167, %s168
    %p182 = scmp.eq.s32.totalorder %s19, 1
    %p183 = por %p181, %p182
    %p185 = scmp.ne.s32.totalorder %s168, %s184
    %p186 = scmp.eq.s32.totalorder %s19, 0
    %p187 = por %p185, %p186
    %p188 = scmp.le.s32.totalorder 1, %s13
    %p189 = scmp.lt.s32.totalorder %s13, 3
    %p190 = pnand %p188, %p189
    %p191 = pneg %p190
    // Predicated region
    $region9: #{gat_layer_pallas.2} parent=5 // pred_check
      _
    $region10: #{gat_layer_pallas.2} parent=5 // pred_check_branch
      %193 = sbr.rel (%p190) target = $region12
    $region11: #{gat_layer_pallas.2} parent=5 // pred_region
      %s194 = ssub.s32 %s13, 1
      // Predicated region
      $region13: #{gat_layer_pallas.2} parent=11 // pred_check
        %p195 = pneg %p60
      $region14: #{gat_layer_pallas.2} parent=11 // pred_check_branch
        %197 = sbr.rel (%p195) target = $region16
      $region15: #{gat_layer_pallas.2} parent=11 // pred_region
        _
      $region16: #{gat_layer_pallas.2} parent=11 // pred_fallthru
        _
      // Predicated region
      $region17: #{gat_layer_pallas.2} parent=11 // pred_check
        %p198 = pneg %p81
      $region18: #{gat_layer_pallas.2} parent=11 // pred_check_branch
        %200 = sbr.rel (%p198) target = $region20
      $region19: #{gat_layer_pallas.2} parent=11 // pred_region
        _
      $region20: #{gat_layer_pallas.2} parent=11 // pred_fallthru
        _
      // Predicated region
      $region21: #{gat_layer_pallas.2} parent=11 // pred_check
        %p201 = pneg %p102
      $region22: #{gat_layer_pallas.2} parent=11 // pred_check_branch
        %203 = sbr.rel (%p201) target = $region24
      $region23: #{gat_layer_pallas.2} parent=11 // pred_region
        _
      $region24: #{gat_layer_pallas.2} parent=11 // pred_fallthru
        _
    $region12: #{gat_layer_pallas.2} parent=5 // pred_fallthru
      _
    %p204 = scmp.lt.s32.totalorder %s13, 2
    // Predicated region
    $region25: #{gat_layer_pallas.2} parent=5 // pred_check
      %p205 = pneg %p204
    $region26: #{gat_layer_pallas.2} parent=5 // pred_check_branch
      %207 = sbr.rel (%p205) target = $region28
    $region27: #{gat_layer_pallas.2} parent=5 // pred_region
      // Predicated region
      $region29: #{gat_layer_pallas.2} parent=27 // pred_check
        %p208 = pneg %p33
      $region30: #{gat_layer_pallas.2} parent=27 // pred_check_branch
        %210 = sbr.rel (%p208) target = $region32
      $region31: #{gat_layer_pallas.2} parent=27 // pred_region
        %s211 = smul.u32 16, %s13
        %p212 = scmp.lt.s32.totalorder %s211, 31
        %s213 = scalar_select %p212, %s211, 31
        %s214 = smul.addr %s213, 8
        %s215 = scalar_lea.vmem %s0, %s214
        %s216 = smul.u32 16, %s13
      $region32: #{gat_layer_pallas.2} parent=27 // pred_fallthru
        _
    $region28: #{gat_layer_pallas.2} parent=5 // pred_fallthru
      _
    %p217 = scmp.le.s32.totalorder 1, %s13
    %p218 = scmp.lt.s32.totalorder %s13, 3
    %p219 = pnand %p217, %p218
    %p220 = pneg %p219
    // Predicated region
    $region33: #{gat_layer_pallas.2} parent=5 // pred_check
      _
    $region34: #{gat_layer_pallas.2} parent=5 // pred_check_branch
      %222 = sbr.rel (%p219) target = $region36
    $region35: #{gat_layer_pallas.2} parent=5 // pred_region
      %s223 = ssub.s32 %s13, 1
      %s224 = smul.u32 16, %s18
      %p225 = scmp.lt.s32.totalorder %s224, 31
      %s226 = scalar_select %p225, %s224, 31
      %s227 = smul.addr %s226, 8
      %s228 = scalar_lea.vmem %s0, %s227
      %p229 = pneg %p39
      %p230 = pneg %p36
      %p231 = pneg %p60
      %p232 = pneg %p57
      %p233 = pneg %p81
      %p234 = pneg %p78
      %p235 = pneg %p102
      %p236 = pneg %p99
      %p237 = pneg %p128
      %p238 = pneg %p125
      %s239 = smul.u32 16, %s18
      %p240 = scmp.lt.s32.totalorder %s239, 31
      %s241 = scalar_select %p240, %s239, 31
      %s242 = smul.addr %s241, 4
      %s243 = scalar_lea.vmem %s4, %s242
      %p244 = pneg %p154
      %p245 = pneg %p151
      %p246 = scmp.lt.s32.totalorder %s18, 1
      %s247 = scalar_select %p246, %s18, 1
      %s248 = scalar_lea.vmem %s5, %s247
      %p249 = pneg %p180
      %p250 = pneg %p177
      %s251 = smul.u32 16, %s18
      %p252 = scmp.lt.s32.totalorder %s251, 31
      %s253 = scalar_select %p252, %s251, 31
      %s254 = smul.addr %s253, 8
      %s255 = scalar_lea.vmem %s6, %s254
      %s256 = smul.u32 16, %s18
      %p257 = scmp.lt.s32.totalorder %s256, 31
      %s258 = scalar_select %p257, %s256, 31
      %s259 = smul.addr %s258, 8
      %s260 = scalar_lea.vmem %s0, %s259
      %s261 = smul.u32 16, %s18
      %s262 = smul.u32 16, %s18
      %p263 = scmp.lt.s32.totalorder %s262, 31
      %s264 = scalar_select %p263, %s262, 31
      %s265 = smul.addr %s264, 4
      %s266 = scalar_lea.vmem %s4, %s265
      %s267 = smul.u32 16, %s18
      %p268 = scmp.lt.s32.totalorder %s18, 1
      %s269 = scalar_select %p268, %s18, 1
      %s270 = scalar_lea.vmem %s5, %s269
      %s271 = smul.u32 16, %s18
      %p272 = scmp.lt.s32.totalorder %s271, 31
      %s273 = scalar_select %p272, %s271, 31
      %s274 = smul.addr %s273, 8
      %s275 = scalar_lea.vmem %s6, %s274
      %s276 = smul.u32 16, %s18
      %v278 = vld [vmem:[%s260] sm:$0xff]
      %v279 = vld [vmem:[%s260 + $0x8] sm:$0xff]
      %v280 = vld [vmem:[%s260 + $0x10] sm:$0xff]
      %v281 = vld [vmem:[%s260 + $0x18] sm:$0xff]
      %v282 = vld [vmem:[%s260 + $0x20] sm:$0xff]
      %v283 = vld [vmem:[%s260 + $0x28] sm:$0xff]
      %v284 = vld [vmem:[%s260 + $0x30] sm:$0xff]
      %v285 = vld [vmem:[%s260 + $0x38] sm:$0xff]
      %v286 = vld [vmem:[%s260 + $0x40] sm:$0xff]
      %v287 = vld [vmem:[%s260 + $0x48] sm:$0xff]
      %v288 = vld [vmem:[%s260 + $0x50] sm:$0xff]
      %v289 = vld [vmem:[%s260 + $0x58] sm:$0xff]
      %v290 = vld [vmem:[%s260 + $0x60] sm:$0xff]
      %v291 = vld [vmem:[%s260 + $0x68] sm:$0xff]
      %v292 = vld [vmem:[%s260 + $0x70] sm:$0xff]
      %v293 = vld [vmem:[%s260 + $0x78] sm:$0xff]
      %v294 = vpack.c.bf16 %v279, %v278
      %v295 = vpack.c.bf16 %v281, %v280
      %v296 = vpack.c.bf16 %v283, %v282
      %v297 = vpack.c.bf16 %v285, %v284
      %v298 = vpack.c.bf16 %v287, %v286
      %v299 = vpack.c.bf16 %v289, %v288
      %v300 = vpack.c.bf16 %v291, %v290
      %v301 = vpack.c.bf16 %v293, %v292
      %v302 = vld [vmem:[%s1] sm:$0xff]
      %v303 = vld [vmem:[%s1 + $0x8] sm:$0xff]
      %v304 = vpack.c.bf16 %v303, %v302
      %vm305 = vcmask 130048
      %v307 = vsel %vm305, %v294, 0
      %v310 = vsel %vm305, %v295, 0
      %v313 = vsel %vm305, %v296, 0
      %v316 = vsel %vm305, %v297, 0
      %v319 = vsel %vm305, %v298, 0
      %v322 = vsel %vm305, %v299, 0
      %v325 = vsel %vm305, %v300, 0
      %v328 = vsel %vm305, %v301, 0
      %330 = vmatprep.subr.bf16.mxu0 0
      %331 = vmatpush1.bf16.msra.mxu0 0
      %332 = vmatprep.subr.bf16.mxu0 0
      %333 = vmatpush1.bf16.msra.mxu0 0
      %334 = vmatprep.subr.bf16.mxu0 0
      %335 = vmatpush1.bf16.msra.mxu0 0
      %336 = vmatprep.subr.bf16.mxu0 0
      %337 = vmatpush1.bf16.msra.mxu0 0
      %338 = vmatprep.subr.bf16.mxu0 0
      %339 = vmatpush1.bf16.msra.mxu0 0
      %340 = vmatprep.subr.bf16.mxu0 0
      %341 = vmatpush1.bf16.msra.mxu0 0
      %342 = vmatprep.subr.bf16.mxu0 0
      %343 = vmatpush1.bf16.msra.mxu0 0
      %344 = vmatprep.subr.bf16.mxu0 0
      %345 = vmatpush1.bf16.msra.mxu0 %v304
      %346 = vmatprep.subr.bf16.mxu0 0
      %347 = vmatpush2.bf16.msra.mxu0 0
      %348 = vmatprep.subr.bf16.mxu0 0
      %349 = vmatpush2.bf16.msra.mxu0 0
      %350 = vmatprep.subr.bf16.mxu0 0
      %351 = vmatpush2.bf16.msra.mxu0 0
      %352 = vmatprep.subr.bf16.mxu0 0
      %353 = vmatpush2.bf16.msra.mxu0 0
      %354 = vmatprep.subr.bf16.mxu0 0
      %355 = vmatpush2.bf16.msra.mxu0 0
      %356 = vmatprep.subr.bf16.mxu0 0
      %357 = vmatpush2.bf16.msra.mxu0 0
      %358 = vmatprep.subr.bf16.mxu0 0
      %359 = vmatpush2.bf16.msra.mxu0 0
      %360 = vmatprep.subr.bf16.mxu0 0
      %361 = vmatpush2.bf16.msra.mxu0 0
      %362 = vmatprep.mubr.bf16.mxu0 0
      %363 = vmatmul.mubr.bf16.gmra.mxu0 %v307
      %v364 = vpop.f32.mrf.mxu0
      %v365 = vadd.f32 0.0, %v364
      %v366 = vpop.f32.mrf.mxu0
      %v367 = vpop.f32.mrf.mxu0
      %v368 = vadd.f32 0.0, %v367
      %v369 = vpop.f32.mrf.mxu0
      %370 = vmatprep.mubr.bf16.mxu0 0
      %371 = vmatmul.mubr.bf16.gmra.mxu0 %v310
      %v372 = vpop.f32.mrf.mxu0
      %v373 = vadd.f32 0.0, %v372
      %v374 = vpop.f32.mrf.mxu0
      %v375 = vpop.f32.mrf.mxu0
      %v376 = vadd.f32 0.0, %v375
      %v377 = vpop.f32.mrf.mxu0
      %378 = vmatprep.mubr.bf16.mxu0 0
      %379 = vmatmul.mubr.bf16.gmra.mxu0 %v313
      %v380 = vpop.f32.mrf.mxu0
      %v381 = vadd.f32 0.0, %v380
      %v382 = vpop.f32.mrf.mxu0
      %v383 = vpop.f32.mrf.mxu0
      %v384 = vadd.f32 0.0, %v383
      %v385 = vpop.f32.mrf.mxu0
      %386 = vmatprep.mubr.bf16.mxu0 0
      %387 = vmatmul.mubr.bf16.gmra.mxu0 %v316
      %v388 = vpop.f32.mrf.mxu0
      %v389 = vadd.f32 0.0, %v388
      %v390 = vpop.f32.mrf.mxu0
      %v391 = vpop.f32.mrf.mxu0
      %v392 = vadd.f32 0.0, %v391
      %v393 = vpop.f32.mrf.mxu0
      %394 = vmatprep.mubr.bf16.mxu0 0
      %395 = vmatmul.mubr.bf16.gmra.mxu0 %v319
      %v396 = vpop.f32.mrf.mxu0
      %v397 = vadd.f32 0.0, %v396
      %v398 = vpop.f32.mrf.mxu0
      %v399 = vpop.f32.mrf.mxu0
      %v400 = vadd.f32 0.0, %v399
      %v401 = vpop.f32.mrf.mxu0
      %402 = vmatprep.mubr.bf16.mxu0 0
      %403 = vmatmul.mubr.bf16.gmra.mxu0 %v322
      %v404 = vpop.f32.mrf.mxu0
      %v405 = vadd.f32 0.0, %v404
      %v406 = vpop.f32.mrf.mxu0
      %v407 = vpop.f32.mrf.mxu0
      %v408 = vadd.f32 0.0, %v407
      %v409 = vpop.f32.mrf.mxu0
      %410 = vmatprep.mubr.bf16.mxu0 0
      %411 = vmatmul.mubr.bf16.gmra.mxu0 %v325
      %v412 = vpop.f32.mrf.mxu0
      %v413 = vadd.f32 0.0, %v412
      %v414 = vpop.f32.mrf.mxu0
      %v415 = vpop.f32.mrf.mxu0
      %v416 = vadd.f32 0.0, %v415
      %v417 = vpop.f32.mrf.mxu0
      %418 = vmatprep.mubr.bf16.mxu0 0
      %419 = vmatmul.mubr.bf16.gmra.mxu0 %v328
      %v420 = vpop.f32.mrf.mxu0
      %v421 = vadd.f32 0.0, %v420
      %v422 = vpop.f32.mrf.mxu0
      %v423 = vpop.f32.mrf.mxu0
      %v424 = vadd.f32 0.0, %v423
      %v425 = vpop.f32.mrf.mxu0
      %426 = vdwg.mxu0
      %v427 = vld [vmem:[%s3] sm:$0x1]
      %v429 = vlaneseq
      %v430 = vshrl.u32 %v429, 7
      %v431 = vsub.s32 0, %v430
      %v432 = vrot.slane %v427, %v431
      %v434 = vmul.f32 %v365, %v432
      %v435 = vmul.f32 %v368, %v432
      %v436 = vmul.f32 %v373, %v432
      %v437 = vmul.f32 %v376, %v432
      %v438 = vmul.f32 %v381, %v432
      %v439 = vmul.f32 %v384, %v432
      %v440 = vmul.f32 %v389, %v432
      %v441 = vmul.f32 %v392, %v432
      %v442 = vmul.f32 %v397, %v432
      %v443 = vmul.f32 %v400, %v432
      %v444 = vmul.f32 %v405, %v432
      %v445 = vmul.f32 %v408, %v432
      %v446 = vmul.f32 %v413, %v432
      %v447 = vmul.f32 %v416, %v432
      %v448 = vmul.f32 %v421, %v432
      %v449 = vmul.f32 %v424, %v432
      %vm450 = vcmask 261120
      %v451 = vsel %vm450, %v434, 0.0
      %452 = vadd.xlane.f32.xlu0 %v451
      %v453 = vpop.xlane.xlu0 %452
      %v454 = vsel %vm450, %v435, 0.0
      %455 = vadd.xlane.f32.xlu0 %v454
      %v456 = vpop.xlane.xlu0 %455
      %v457 = vsel %vm450, %v436, 0.0
      %458 = vadd.xlane.f32.xlu0 %v457
      %v459 = vpop.xlane.xlu0 %458
      %v460 = vsel %vm450, %v437, 0.0
      %461 = vadd.xlane.f32.xlu0 %v460
      %v462 = vpop.xlane.xlu0 %461
      %v463 = vsel %vm450, %v438, 0.0
      %464 = vadd.xlane.f32.xlu0 %v463
      %v465 = vpop.xlane.xlu0 %464
      %v466 = vsel %vm450, %v439, 0.0
      %467 = vadd.xlane.f32.xlu0 %v466
      %v468 = vpop.xlane.xlu0 %467
      %v469 = vsel %vm450, %v440, 0.0
      %470 = vadd.xlane.f32.xlu0 %v469
      %v471 = vpop.xlane.xlu0 %470
      %v472 = vsel %vm450, %v441, 0.0
      %473 = vadd.xlane.f32.xlu0 %v472
      %v474 = vpop.xlane.xlu0 %473
      %v475 = vsel %vm450, %v442, 0.0
      %476 = vadd.xlane.f32.xlu0 %v475
      %v477 = vpop.xlane.xlu0 %476
      %v478 = vsel %vm450, %v443, 0.0
      %479 = vadd.xlane.f32.xlu0 %v478
      %v480 = vpop.xlane.xlu0 %479
      %v481 = vsel %vm450, %v444, 0.0
      %482 = vadd.xlane.f32.xlu0 %v481
      %v483 = vpop.xlane.xlu0 %482
      %v484 = vsel %vm450, %v445, 0.0
      %485 = vadd.xlane.f32.xlu0 %v484
      %v486 = vpop.xlane.xlu0 %485
      %v487 = vsel %vm450, %v446, 0.0
      %488 = vadd.xlane.f32.xlu0 %v487
      %v489 = vpop.xlane.xlu0 %488
      %v490 = vsel %vm450, %v447, 0.0
      %491 = vadd.xlane.f32.xlu0 %v490
      %v492 = vpop.xlane.xlu0 %491
      %v493 = vsel %vm450, %v448, 0.0
      %494 = vadd.xlane.f32.xlu0 %v493
      %v495 = vpop.xlane.xlu0 %494
      %v496 = vsel %vm450, %v449, 0.0
      %497 = vadd.xlane.f32.xlu0 %v496
      %v498 = vpop.xlane.xlu0 %497
      %vm499 = vcmask 7168
      %500 = vst.msk [vmem:[%s275] sm:$0xff] %vm499, %v453
      %501 = vst.msk [vmem:[%s275 + $0x8] sm:$0xff] %vm499, %v456
      %502 = vst.msk [vmem:[%s275 + $0x10] sm:$0xff] %vm499, %v459
      %503 = vst.msk [vmem:[%s275 + $0x18] sm:$0xff] %vm499, %v462
      %504 = vst.msk [vmem:[%s275 + $0x20] sm:$0xff] %vm499, %v465
      %505 = vst.msk [vmem:[%s275 + $0x28] sm:$0xff] %vm499, %v468
      %506 = vst.msk [vmem:[%s275 + $0x30] sm:$0xff] %vm499, %v471
      %507 = vst.msk [vmem:[%s275 + $0x38] sm:$0xff] %vm499, %v474
      %508 = vst.msk [vmem:[%s275 + $0x40] sm:$0xff] %vm499, %v477
      %509 = vst.msk [vmem:[%s275 + $0x48] sm:$0xff] %vm499, %v480
      %510 = vst.msk [vmem:[%s275 + $0x50] sm:$0xff] %vm499, %v483
      %511 = vst.msk [vmem:[%s275 + $0x58] sm:$0xff] %vm499, %v486
      %512 = vst.msk [vmem:[%s275 + $0x60] sm:$0xff] %vm499, %v489
      %513 = vst.msk [vmem:[%s275 + $0x68] sm:$0xff] %vm499, %v492
      %514 = vst.msk [vmem:[%s275 + $0x70] sm:$0xff] %vm499, %v495
      %515 = vst.msk [vmem:[%s275 + $0x78] sm:$0xff] %vm499, %v498
      %v516 = vld [vmem:[%s2] sm:$0x1]
      %v518 = vsel %vm450, %v516, 0
      %v521 = vsel %vm450, %v365, 0
      %v524 = vsel %vm450, %v368, 0
      %v527 = vsel %vm450, %v373, 0
      %v530 = vsel %vm450, %v376, 0
      %v533 = vsel %vm450, %v381, 0
      %v536 = vsel %vm450, %v384, 0
      %v539 = vsel %vm450, %v389, 0
      %v542 = vsel %vm450, %v392, 0
      %v545 = vsel %vm450, %v397, 0
      %v548 = vsel %vm450, %v400, 0
      %v551 = vsel %vm450, %v405, 0
      %v554 = vsel %vm450, %v408, 0
      %v557 = vsel %vm450, %v413, 0
      %v560 = vsel %vm450, %v416, 0
      %v563 = vsel %vm450, %v421, 0
      %v566 = vsel %vm450, %v424, 0
      %568 = vmatprep.subr.mxu0 0.0
      %569 = vmatpush1.xpose.msra.mxu0 %v566
      %570 = vmatprep.subr.mxu0 0.0
      %571 = vmatpush1.xpose.msra.mxu0 %v563
      %572 = vmatprep.subr.mxu0 0.0
      %573 = vmatpush1.xpose.msra.mxu0 %v560
      %574 = vmatprep.subr.mxu0 0.0
      %575 = vmatpush1.xpose.msra.mxu0 %v557
      %576 = vmatprep.subr.mxu0 0.0
      %577 = vmatpush1.xpose.msra.mxu0 %v554
      %578 = vmatprep.subr.mxu0 0.0
      %579 = vmatpush1.xpose.msra.mxu0 %v551
      %580 = vmatprep.subr.mxu0 0.0
      %581 = vmatpush1.xpose.msra.mxu0 %v548
      %582 = vmatprep.subr.mxu0 0.0
      %583 = vmatpush1.xpose.msra.mxu0 %v545
      %584 = vmatprep.subr.mxu0 0.0
      %585 = vmatpush1.xpose.msra.mxu0 %v542
      %586 = vmatprep.subr.mxu0 0.0
      %587 = vmatpush1.xpose.msra.mxu0 %v539
      %588 = vmatprep.subr.mxu0 0.0
      %589 = vmatpush1.xpose.msra.mxu0 %v536
      %590 = vmatprep.subr.mxu0 0.0
      %591 = vmatpush1.xpose.msra.mxu0 %v533
      %592 = vmatprep.subr.mxu0 0.0
      %593 = vmatpush1.xpose.msra.mxu0 %v530
      %594 = vmatprep.subr.mxu0 0.0
      %595 = vmatpush1.xpose.msra.mxu0 %v527
      %596 = vmatprep.subr.mxu0 0.0
      %597 = vmatpush1.xpose.msra.mxu0 %v524
      %598 = vmatprep.subr.mxu0 0.0
      %599 = vmatpush1.xpose.msra.mxu0 %v521
      %600 = vmatprep.subr.mxu0 0.0
      %601 = vmatpush2.xpose.msra.mxu0 0.0
      %602 = vmatprep.subr.mxu0 0.0
      %603 = vmatpush2.xpose.msra.mxu0 0.0
      %604 = vmatprep.subr.mxu0 0.0
      %605 = vmatpush2.xpose.msra.mxu0 0.0
      %606 = vmatprep.subr.mxu0 0.0
      %607 = vmatpush2.xpose.msra.mxu0 0.0
      %608 = vmatprep.subr.mxu0 0.0
      %609 = vmatpush2.xpose.msra.mxu0 0.0
      %610 = vmatprep.subr.mxu0 0.0
      %611 = vmatpush2.xpose.msra.mxu0 0.0
      %612 = vmatprep.subr.mxu0 0.0
      %613 = vmatpush2.xpose.msra.mxu0 0.0
      %614 = vmatprep.subr.mxu0 0.0
      %615 = vmatpush2.xpose.msra.mxu0 0.0
      %616 = vmatprep.subr.mxu0 0.0
      %617 = vmatpush2.xpose.msra.mxu0 0.0
      %618 = vmatprep.subr.mxu0 0.0
      %619 = vmatpush2.xpose.msra.mxu0 0.0
      %620 = vmatprep.subr.mxu0 0.0
      %621 = vmatpush2.xpose.msra.mxu0 0.0
      %622 = vmatprep.subr.mxu0 0.0
      %623 = vmatpush2.xpose.msra.mxu0 0.0
      %624 = vmatprep.subr.mxu0 0.0
      %625 = vmatpush2.xpose.msra.mxu0 0.0
      %626 = vmatprep.subr.mxu0 0.0
      %627 = vmatpush2.xpose.msra.mxu0 0.0
      %628 = vmatprep.subr.mxu0 0.0
      %629 = vmatpush2.xpose.msra.mxu0 0.0
      %630 = vmatprep.subr.mxu0 0.0
      %631 = vmatpush2.xpose.msra.mxu0 0.0
      %632 = vmatprep.mubr.f32.mxu0 0.0
      %633 = vmatmul.mubr.f32.gmra.mxu0 %v518
      %v634 = vpop.f32.mrf.mxu0
      %v635 = vadd.f32 0.0, %v634
      %v636 = vpop.f32.mrf.mxu0
      %637 = vdwg.mxu0
      %638 = vst [vmem:[%s270] sm:$0x1] %v635
      %v639 = vpack.c.bf16 %v368, %v365
      %v640 = vpack.c.bf16 %v376, %v373
      %v641 = vpack.c.bf16 %v384, %v381
      %v642 = vpack.c.bf16 %v392, %v389
      %v643 = vpack.c.bf16 %v400, %v397
      %v644 = vpack.c.bf16 %v408, %v405
      %v645 = vpack.c.bf16 %v416, %v413
      %v646 = vpack.c.bf16 %v424, %v421
      %v655 = vunpack.c.l.b16 %v639
      %v656 = vunpack.c.h.b16 %v639
      %v657 = vunpack.c.l.b16 %v640
      %v658 = vunpack.c.h.b16 %v640
      %v659 = vunpack.c.l.b16 %v641
      %v660 = vunpack.c.h.b16 %v641
      %v661 = vunpack.c.l.b16 %v642
      %v662 = vunpack.c.h.b16 %v642
      %v663 = vunpack.c.l.b16 %v643
      %v664 = vunpack.c.h.b16 %v643
      %v665 = vunpack.c.l.b16 %v644
      %v666 = vunpack.c.h.b16 %v644
      %v667 = vunpack.c.l.b16 %v645
      %v668 = vunpack.c.h.b16 %v645
      %v669 = vunpack.c.l.b16 %v646
      %v670 = vunpack.c.h.b16 %v646
      %v671 = vpack.c.b16 %v655, %v655
      %v672 = vpack.c.b16 %v656, %v656
      %v673 = vpack.c.b16 %v657, %v657
      %v674 = vpack.c.b16 %v658, %v658
      %v675 = vpack.c.b16 %v659, %v659
      %v676 = vpack.c.b16 %v660, %v660
      %v677 = vpack.c.b16 %v661, %v661
      %v678 = vpack.c.b16 %v662, %v662
      %v679 = vpack.c.b16 %v663, %v663
      %v680 = vpack.c.b16 %v664, %v664
      %v681 = vpack.c.b16 %v665, %v665
      %v682 = vpack.c.b16 %v666, %v666
      %v683 = vpack.c.b16 %v667, %v667
      %v684 = vpack.c.b16 %v668, %v668
      %v685 = vpack.c.b16 %v669, %v669
      %v686 = vpack.c.b16 %v670, %v670
      %vm703 = vcmask 257024
      %704 = vst.msk [vmem:[%s266] sm:$0xf] %vm703, %v671
      %705 = vst.msk [vmem:[%s266 + $0x4] sm:$0xf] %vm703, %v672
      %706 = vst.msk [vmem:[%s266 + $0x8] sm:$0xf] %vm703, %v673
      %707 = vst.msk [vmem:[%s266 + $0xc] sm:$0xf] %vm703, %v674
      %708 = vst.msk [vmem:[%s266 + $0x10] sm:$0xf] %vm703, %v675
      %709 = vst.msk [vmem:[%s266 + $0x14] sm:$0xf] %vm703, %v676
      %710 = vst.msk [vmem:[%s266 + $0x18] sm:$0xf] %vm703, %v677
      %711 = vst.msk [vmem:[%s266 + $0x1c] sm:$0xf] %vm703, %v678
      %712 = vst.msk [vmem:[%s266 + $0x20] sm:$0xf] %vm703, %v679
      %713 = vst.msk [vmem:[%s266 + $0x24] sm:$0xf] %vm703, %v680
      %714 = vst.msk [vmem:[%s266 + $0x28] sm:$0xf] %vm703, %v681
      %715 = vst.msk [vmem:[%s266 + $0x2c] sm:$0xf] %vm703, %v682
      %716 = vst.msk [vmem:[%s266 + $0x30] sm:$0xf] %vm703, %v683
      %717 = vst.msk [vmem:[%s266 + $0x34] sm:$0xf] %vm703, %v684
      %718 = vst.msk [vmem:[%s266 + $0x38] sm:$0xf] %vm703, %v685
      %719 = vst.msk [vmem:[%s266 + $0x3c] sm:$0xf] %vm703, %v686
      %s720 = smul.u32 16, %s18
      %p721 = scmp.lt.s32.totalorder %s720, 31
      %s722 = scalar_select %p721, %s720, 31
      %s723 = smul.addr %s722, 4
      %s724 = scalar_lea.vmem %s4, %s723
      %p725 = scmp.lt.s32.totalorder %s18, 1
      %s726 = scalar_select %p725, %s18, 1
      %s727 = scalar_lea.vmem %s5, %s726
      %s728 = smul.u32 16, %s18
      %p729 = scmp.lt.s32.totalorder %s728, 31
      %s730 = scalar_select %p729, %s728, 31
      %s731 = smul.addr %s730, 8
      %s732 = scalar_lea.vmem %s6, %s731
      // Predicated region
      $region37: #{gat_layer_pallas.2} parent=35 // pred_check
        %p733 = pneg %p125
      $region38: #{gat_layer_pallas.2} parent=35 // pred_check_branch
        %735 = sbr.rel (%p733) target = $region40
      $region39: #{gat_layer_pallas.2} parent=35 // pred_region
        %s736 = smul.u32 16, %s18
      $region40: #{gat_layer_pallas.2} parent=35 // pred_fallthru
        _
      // Predicated region
      $region41: #{gat_layer_pallas.2} parent=35 // pred_check
        %p737 = pneg %p151
      $region42: #{gat_layer_pallas.2} parent=35 // pred_check_branch
        %739 = sbr.rel (%p737) target = $region44
      $region43: #{gat_layer_pallas.2} parent=35 // pred_region
        _
      $region44: #{gat_layer_pallas.2} parent=35 // pred_fallthru
        _
      // Predicated region
      $region45: #{gat_layer_pallas.2} parent=35 // pred_check
        %p740 = pneg %p177
      $region46: #{gat_layer_pallas.2} parent=35 // pred_check_branch
        %742 = sbr.rel (%p740) target = $region48
      $region47: #{gat_layer_pallas.2} parent=35 // pred_region
        %s743 = smul.u32 16, %s18
      $region48: #{gat_layer_pallas.2} parent=35 // pred_fallthru
        _
    $region36: #{gat_layer_pallas.2} parent=5 // pred_fallthru
      _
    %p744 = scmp.le.s32.totalorder 2, %s13
    // Predicated region
    $region49: #{gat_layer_pallas.2} parent=5 // pred_check
      %p745 = pneg %p744
    $region50: #{gat_layer_pallas.2} parent=5 // pred_check_branch
      %747 = sbr.rel (%p745) target = $region52
    $region51: #{gat_layer_pallas.2} parent=5 // pred_region
      %s748 = ssub.s32 %s13, 2
      // Predicated region
      $region53: #{gat_layer_pallas.2} parent=51 // pred_check
        %p749 = pneg %p131
      $region54: #{gat_layer_pallas.2} parent=51 // pred_check_branch
        %751 = sbr.rel (%p749) target = $region56
      $region55: #{gat_layer_pallas.2} parent=51 // pred_region
        %s752 = smul.u32 16, %s19
        %p753 = scmp.lt.s32.totalorder %s752, 31
        %s754 = scalar_select %p753, %s752, 31
        %s755 = smul.addr %s754, 4
        %s756 = scalar_lea.vmem %s4, %s755
      $region56: #{gat_layer_pallas.2} parent=51 // pred_fallthru
        _
      // Predicated region
      $region57: #{gat_layer_pallas.2} parent=51 // pred_check
        %p757 = pneg %p157
      $region58: #{gat_layer_pallas.2} parent=51 // pred_check_branch
        %759 = sbr.rel (%p757) target = $region60
      $region59: #{gat_layer_pallas.2} parent=51 // pred_region
        %p760 = scmp.lt.s32.totalorder %s19, 1
        %s761 = scalar_select %p760, %s19, 1
        %s762 = scalar_lea.vmem %s5, %s761
      $region60: #{gat_layer_pallas.2} parent=51 // pred_fallthru
        _
      // Predicated region
      $region61: #{gat_layer_pallas.2} parent=51 // pred_check
        %p763 = pneg %p183
      $region62: #{gat_layer_pallas.2} parent=51 // pred_check_branch
        %765 = sbr.rel (%p763) target = $region64
      $region63: #{gat_layer_pallas.2} parent=51 // pred_region
        %s766 = smul.u32 16, %s19
        %p767 = scmp.lt.s32.totalorder %s766, 31
        %s768 = scalar_select %p767, %s766, 31
        %s769 = smul.addr %s768, 8
        %s770 = scalar_lea.vmem %s6, %s769
      $region64: #{gat_layer_pallas.2} parent=51 // pred_fallthru
        _
    $region52: #{gat_layer_pallas.2} parent=5 // pred_fallthru
      _
  $region6: #{gat_layer_pallas.2} parent=0 // loop_footer
    %s17 = sadd.s32 1, %s13
  $region7: #{gat_layer_pallas.2} parent=0 // loop_footer_branch
    %12 = sbr.rel target = $region3
  $region8: #{gat_layer_pallas.2} parent=0 // loop_exit
    _

// kernel: gat_layer_pallas.3
$region0: #{gat_layer_pallas.3}
  #allocation0 [shape = 'u32[]', space=smem, size = 0x4, offset = 0x4, fixed_abs, tag = 'smem constant byte address 0x4 - core index']
  #allocation1 [shape = 'u32[144,128]{1,0:T(1,128)}', space=vmem, size = 0x12000, scoped, tag = 'internal scratch']
  #allocation2 [shape = 'f32[128,1]{1,0:T(8,128)}', space=vmem, size = 0x10000, scoped, tag = 'scratch operand']
  #allocation3 [shape = 'f32[128,1]{1,0:T(8,128)}', space=vmem, size = 0x10000, scoped, tag = 'scratch operand']
  #allocation4 [shape = 'f32[128,32]{1,0:T(8,128)}', space=vmem, size = 0x10000, scoped, tag = 'scratch operand']
  %s0 = inlined_call_operand.vmem [shape: f32[256,1], index: 0, kind: input, shape index: {}]
  %s1 = inlined_call_operand.vmem [shape: f32[1,256], index: 1, kind: input, shape index: {}]
  %s2 = inlined_call_operand.vmem [shape: bf16[256,32], index: 2, kind: input, shape index: {}]
  %s3 = inlined_call_operand.vmem [shape: s8[256,256], index: 3, kind: input, shape index: {}]
  %s4 = inlined_call_operand.vmem [shape: f32[1,32], index: 4, kind: input, shape index: {}]
  %s5 = inlined_call_operand.vmem [shape: f32[256,32], index: 5, kind: output, shape index: {}]
  %s6 = sld [smem:[#allocation0]]
  $region99: #{gat_layer_pallas.3} parent=0
    _
  %s8 = ssub.s32 1, %s6
  %s9 = scalar_select 0, %s8, %s6
  $region1: #{gat_layer_pallas.3} parent=0
    #allocation5 [shape = 'u8[32768]{0}', space=vmem, size = 0x8000, scoped, tag = 'input window, operand 3']
    loop: start=0, step=1, limit=6
    $region2: #{gat_layer_pallas.3} parent=1 // loop_pre_header
      _
    $region3: #{gat_layer_pallas.3} parent=1 // loop_header
      %s11 = sphi 0, %s15
      %p12 = scmp.ge.s32.totalorder %s11, 6
      %s18 = sphi 0, %s30
      %s19 = sphi 0, %s26
      %s20 = sphi 0, %s18
      %s21 = sphi 0, %s19
      %s22 = sphi 0, %s20
      %s23 = sphi 0, %s21
      %s33 = sphi 0, %s35
      %s36 = sphi 0, %s33
      %s37 = sphi 0, %s36
      %s53 = sphi 0, %s37
      %s59 = sphi 0, %s61
      %s62 = sphi 0, %s59
      %s63 = sphi 0, %s62
      %s79 = sphi 0, %s63
      %s85 = sphi 0, %s87
      %s88 = sphi 0, %s85
      %s89 = sphi 0, %s88
      %s105 = sphi 0, %s89
      %s113 = sphi 0, %s115
      %s116 = sphi 0, %s113
      %s117 = sphi 0, %s116
      %s133 = sphi 0, %s117
      %s137 = sphi 0, %s137
      %s139 = sphi 0, %s137
      %s140 = sphi 0, %s139
      %s154 = sphi 0, %s140
      %s160 = sphi 0, %s162
      %s163 = sphi 0, %s160
      %s164 = sphi 0, %s163
      %s180 = sphi 0, %s164
    $region4: #{gat_layer_pallas.3} parent=1 // loop_header_branch
      %14 = sbr.rel (%p12) target = $region8
    $region5: #{gat_layer_pallas.3} parent=1 // loop_body
      %s16 = ssub.s32 %s11, 1
      %s17 = ssub.s32 %s11, 2
      %s24 = sadd.s32 1, %s19
      %p25 = scmp.ge.s32.totalorder %s24, 2
      %s26 = scalar_select %p25, 0, %s24
      %s27 = sadd.s32 1, %s18
      %s28 = scalar_select %p25, %s27, %s18
      %p29 = scmp.ge.s32.totalorder %s28, 2
      %s30 = scalar_select %p29, 0, %s28
      %s31 = ssub.s32 %s18, %s30
      %p32 = scmp.eq.s32.totalorder %s31, 0
      %s34 = sadd.s32 %s33, 1
      %s35 = scalar_select %p32, %s33, %s34
      %p38 = pneg %p32
      %p39 = scmp.eq.s32.totalorder %s11, 3
      %p40 = por %p38, %p39
      %p41 = scmp.ne.s32.totalorder %s33, %s36
      %p42 = scmp.eq.s32.totalorder %s11, 0
      %p43 = por %p41, %p42
      %p44 = scmp.ne.s32.totalorder %s33, %s36
      %p45 = scmp.eq.s32.totalorder %s16, 3
      %p46 = por %p44, %p45
      %p47 = scmp.ne.s32.totalorder %s36, %s37
      %p48 = scmp.eq.s32.totalorder %s16, 0
      %p49 = por %p47, %p48
      %p50 = scmp.ne.s32.totalorder %s36, %s37
      %p51 = scmp.eq.s32.totalorder %s17, 3
      %p52 = por %p50, %p51
      %p54 = scmp.ne.s32.totalorder %s37, %s53
      %p55 = scmp.eq.s32.totalorder %s17, 0
      %p56 = por %p54, %p55
      %s57 = ssub.s32 %s19, %s26
      %p58 = scmp.eq.s32.totalorder %s57, 0
      %s60 = sadd.s32 %s59, 1
      %s61 = scalar_select %p58, %s59, %s60
      %p64 = pneg %p58
      %p65 = scmp.eq.s32.totalorder %s11, 3
      %p66 = por %p64, %p65
      %p67 = scmp.ne.s32.totalorder %s59, %s62
      %p68 = scmp.eq.s32.totalorder %s11, 0
      %p69 = por %p67, %p68
      %p70 = scmp.ne.s32.totalorder %s59, %s62
      %p71 = scmp.eq.s32.totalorder %s16, 3
      %p72 = por %p70, %p71
      %p73 = scmp.ne.s32.totalorder %s62, %s63
      %p74 = scmp.eq.s32.totalorder %s16, 0
      %p75 = por %p73, %p74
      %p76 = scmp.ne.s32.totalorder %s62, %s63
      %p77 = scmp.eq.s32.totalorder %s17, 3
      %p78 = por %p76, %p77
      %p80 = scmp.ne.s32.totalorder %s63, %s79
      %p81 = scmp.eq.s32.totalorder %s17, 0
      %p82 = por %p80, %p81
      %s83 = ssub.s32 %s19, %s26
      %p84 = scmp.eq.s32.totalorder %s83, 0
      %s86 = sadd.s32 %s85, 1
      %s87 = scalar_select %p84, %s85, %s86
      %p90 = pneg %p84
      %p91 = scmp.eq.s32.totalorder %s11, 3
      %p92 = por %p90, %p91
      %p93 = scmp.ne.s32.totalorder %s85, %s88
      %p94 = scmp.eq.s32.totalorder %s11, 0
      %p95 = por %p93, %p94
      %p96 = scmp.ne.s32.totalorder %s85, %s88
      %p97 = scmp.eq.s32.totalorder %s16, 3
      %p98 = por %p96, %p97
      %p99 = scmp.ne.s32.totalorder %s88, %s89
      %p100 = scmp.eq.s32.totalorder %s16, 0
      %p101 = por %p99, %p100
      %p102 = scmp.ne.s32.totalorder %s88, %s89
      %p103 = scmp.eq.s32.totalorder %s17, 3
      %p104 = por %p102, %p103
      %p106 = scmp.ne.s32.totalorder %s89, %s105
      %p107 = scmp.eq.s32.totalorder %s17, 0
      %p108 = por %p106, %p107
      %s109 = ssub.s32 %s18, %s30
      %s110 = ssub.s32 %s19, %s26
      %s111 = sor.u32 %s109, %s110
      %p112 = scmp.eq.s32.totalorder %s111, 0
      %s114 = sadd.s32 %s113, 1
      %s115 = scalar_select %p112, %s113, %s114
      %p118 = pneg %p112
      %p119 = scmp.eq.s32.totalorder %s11, 3
      %p120 = por %p118, %p119
      %p121 = scmp.ne.s32.totalorder %s113, %s116
      %p122 = scmp.eq.s32.totalorder %s11, 0
      %p123 = por %p121, %p122
      %p124 = scmp.ne.s32.totalorder %s113, %s116
      %p125 = scmp.eq.s32.totalorder %s16, 3
      %p126 = por %p124, %p125
      %p127 = scmp.ne.s32.totalorder %s116, %s117
      %p128 = scmp.eq.s32.totalorder %s16, 0
      %p129 = por %p127, %p128
      %p130 = scmp.ne.s32.totalorder %s116, %s117
      %p131 = scmp.eq.s32.totalorder %s17, 3
      %p132 = por %p130, %p131
      %p134 = scmp.ne.s32.totalorder %s117, %s133
      %p135 = scmp.eq.s32.totalorder %s17, 0
      %p136 = por %p134, %p135
      %s138 = sadd.s32 %s137, 1
      %p141 = scmp.eq.s32.totalorder %s11, 3
      %p142 = scmp.ne.s32.totalorder %s137, %s139
      %p143 = scmp.eq.s32.totalorder %s11, 0
      %p144 = por %p142, %p143
      %p145 = scmp.ne.s32.totalorder %s137, %s139
      %p146 = scmp.eq.s32.totalorder %s16, 3
      %p147 = por %p145, %p146
      %p148 = scmp.ne.s32.totalorder %s139, %s140
      %p149 = scmp.eq.s32.totalorder %s16, 0
      %p150 = por %p148, %p149
      %p151 = scmp.ne.s32.totalorder %s139, %s140
      %p152 = scmp.eq.s32.totalorder %s17, 3
      %p153 = por %p151, %p152
      %p155 = scmp.ne.s32.totalorder %s140, %s154
      %p156 = scmp.eq.s32.totalorder %s17, 0
      %p157 = por %p155, %p156
      %s158 = ssub.s32 %s18, %s30
      %p159 = scmp.eq.s32.totalorder %s158, 0
      %s161 = sadd.s32 %s160, 1
      %s162 = scalar_select %p159, %s160, %s161
      %p165 = pneg %p159
      %p166 = scmp.eq.s32.totalorder %s11, 3
      %p167 = por %p165, %p166
      %p168 = scmp.ne.s32.totalorder %s160, %s163
      %p169 = scmp.eq.s32.totalorder %s11, 0
      %p170 = por %p168, %p169
      %p171 = scmp.ne.s32.totalorder %s160, %s163
      %p172 = scmp.eq.s32.totalorder %s16, 3
      %p173 = por %p171, %p172
      %p174 = scmp.ne.s32.totalorder %s163, %s164
      %p175 = scmp.eq.s32.totalorder %s16, 0
      %p176 = por %p174, %p175
      %p177 = scmp.ne.s32.totalorder %s163, %s164
      %p178 = scmp.eq.s32.totalorder %s17, 3
      %p179 = por %p177, %p178
      %p181 = scmp.ne.s32.totalorder %s164, %s180
      %p182 = scmp.eq.s32.totalorder %s17, 0
      %p183 = por %p181, %p182
      %p184 = scmp.le.s32.totalorder 1, %s11
      %p185 = scmp.lt.s32.totalorder %s11, 5
      %p186 = pnand %p184, %p185
      %p187 = pneg %p186
      // Predicated region
      $region9: #{gat_layer_pallas.3} parent=5 // pred_check
        _
      $region10: #{gat_layer_pallas.3} parent=5 // pred_check_branch
        %189 = sbr.rel (%p186) target = $region12
      $region11: #{gat_layer_pallas.3} parent=5 // pred_region
        %s190 = ssub.s32 %s11, 1
        // Predicated region
        $region13: #{gat_layer_pallas.3} parent=11 // pred_check
          %p191 = pneg %p150
        $region14: #{gat_layer_pallas.3} parent=11 // pred_check_branch
          %193 = sbr.rel (%p191) target = $region16
        $region15: #{gat_layer_pallas.3} parent=11 // pred_region
          _
        $region16: #{gat_layer_pallas.3} parent=11 // pred_fallthru
          _
      $region12: #{gat_layer_pallas.3} parent=5 // pred_fallthru
        _
      %p194 = scmp.lt.s32.totalorder %s11, 4
      // Predicated region
      $region17: #{gat_layer_pallas.3} parent=5 // pred_check
        %p195 = pneg %p194
      $region18: #{gat_layer_pallas.3} parent=5 // pred_check_branch
        %197 = sbr.rel (%p195) target = $region20
      $region19: #{gat_layer_pallas.3} parent=5 // pred_region
        // Predicated region
        $region21: #{gat_layer_pallas.3} parent=19 // pred_check
          %p198 = pneg %p43
        $region22: #{gat_layer_pallas.3} parent=19 // pred_check_branch
          %200 = sbr.rel (%p198) target = $region24
        $region23: #{gat_layer_pallas.3} parent=19 // pred_region
          %s201 = smul.u32 16, %s18
          %p202 = scmp.lt.s32.totalorder %s201, 31
          %s203 = scalar_select %p202, %s201, 31
          %s204 = smul.addr %s203, 8
          %s205 = scalar_lea.vmem %s0, %s204
          %s206 = smul.u32 16, %s18
        $region24: #{gat_layer_pallas.3} parent=19 // pred_fallthru
          _
        // Predicated region
        $region25: #{gat_layer_pallas.3} parent=19 // pred_check
          %p207 = pneg %p69
        $region26: #{gat_layer_pallas.3} parent=19 // pred_check_branch
          %209 = sbr.rel (%p207) target = $region28
        $region27: #{gat_layer_pallas.3} parent=19 // pred_region
          %p210 = scmp.lt.s32.totalorder %s19, 1
          %s211 = scalar_select %p210, %s19, 1
          %s212 = scalar_lea.vmem %s1, %s211
        $region28: #{gat_layer_pallas.3} parent=19 // pred_fallthru
          _
        // Predicated region
        $region29: #{gat_layer_pallas.3} parent=19 // pred_check
          %p213 = pneg %p95
        $region30: #{gat_layer_pallas.3} parent=19 // pred_check_branch
          %215 = sbr.rel (%p213) target = $region32
        $region31: #{gat_layer_pallas.3} parent=19 // pred_region
          %s216 = smul.u32 16, %s19
          %p217 = scmp.lt.s32.totalorder %s216, 31
          %s218 = scalar_select %p217, %s216, 31
          %s219 = smul.addr %s218, 4
          %s220 = scalar_lea.vmem %s2, %s219
          %s221 = smul.u32 16, %s19
        $region32: #{gat_layer_pallas.3} parent=19 // pred_fallthru
          _
        // Predicated region
        $region33: #{gat_layer_pallas.3} parent=19 // pred_check
          %p222 = pneg %p123
        $region34: #{gat_layer_pallas.3} parent=19 // pred_check_branch
          %224 = sbr.rel (%p222) target = $region36
        $region35: #{gat_layer_pallas.3} parent=19 // pred_region
          %s225 = sand.u32 %s113, 1
          %s226 = sand.u32 %s113, 1
          %s227 = smul.addr %s226, 32
          %s228 = scalar_lea.vmem [#allocation5], %s227
          %s229 = smul.u32 4, %s18
          %s230 = smul.addr %s229, 2
          %s231 = sadd.s32 %s19, %s230
          %s232 = smul.addr %s231, 8
          %s233 = scalar_lea.vmem %s3, %s232
          // Predicated region
          $region37: #{gat_layer_pallas.3} parent=35 // pred_check
            _
          $region38: #{gat_layer_pallas.3} parent=35 // pred_check_branch
            %235 = sbr.rel (0) target = $region40
          $region39: #{gat_layer_pallas.3} parent=35 // pred_region
            // Predicated region
            $region41: #{gat_layer_pallas.3} parent=39 // pred_check
              _
            $region42: #{gat_layer_pallas.3} parent=39 // pred_check_branch
              %237 = sbr.rel (0) target = $region44
            $region43: #{gat_layer_pallas.3} parent=39 // pred_region
              // Predicated region
              $region56: #{gat_layer_pallas.3} parent=43 // pred_check
                _
              $region57: #{gat_layer_pallas.3} parent=43 // pred_check_branch
                %259 = sbr.rel (0) target = $region59
              $region58: #{gat_layer_pallas.3} parent=43 // pred_region
                loop: start=0, step=1, limit=1
                $region60: #{gat_layer_pallas.3} parent=58 // loop_pre_header
                  _
                $region61: #{gat_layer_pallas.3} parent=58 // loop_header
                  %s261 = sphi 0, %s265
                  %p262 = scmp.ge.s32.totalorder %s261, 1
                  %s266 = sphi %s233, %s233
                  %s267 = sphi %s228, %s228
                $region62: #{gat_layer_pallas.3} parent=58 // loop_header_branch
                  %264 = sbr.rel (%p262) target = $region66
                $region63: #{gat_layer_pallas.3} parent=58 // loop_body
                  %v268 = vld [vmem:[%s266] sm:$0xff]
                  %269 = vst [vmem:[%s267] sm:$0xff] %v268
                  %v270 = vld [vmem:[%s266 + $0x10] sm:$0xff]
                  %271 = vst [vmem:[%s267 + $0x8] sm:$0xff] %v270
                  %v272 = vld [vmem:[%s266 + $0x20] sm:$0xff]
                  %273 = vst [vmem:[%s267 + $0x10] sm:$0xff] %v272
                  %v274 = vld [vmem:[%s266 + $0x30] sm:$0xff]
                  %275 = vst [vmem:[%s267 + $0x18] sm:$0xff] %v274
                $region64: #{gat_layer_pallas.3} parent=58 // loop_footer
                  %s265 = sadd.s32 1, %s261
                $region65: #{gat_layer_pallas.3} parent=58 // loop_footer_branch
                  %260 = sbr.rel target = $region61
                $region66: #{gat_layer_pallas.3} parent=58 // loop_exit
                  _
              $region59: #{gat_layer_pallas.3} parent=43 // pred_fallthru
                _
              // Predicated region
              $region67: #{gat_layer_pallas.3} parent=43 // pred_check
                _
              $region68: #{gat_layer_pallas.3} parent=43 // pred_check_branch
                %277 = sbr.rel target = $region70
              $region69: #{gat_layer_pallas.3} parent=43 // pred_region
                _
              $region70: #{gat_layer_pallas.3} parent=43 // pred_fallthru
                _
            $region44: #{gat_layer_pallas.3} parent=39 // pred_fallthru
              _
            // Predicated region
            $region45: #{gat_layer_pallas.3} parent=39 // pred_check
              _
            $region46: #{gat_layer_pallas.3} parent=39 // pred_check_branch
              %239 = sbr.rel target = $region48
            $region47: #{gat_layer_pallas.3} parent=39 // pred_region
              %s241 = ssub.s32 256, 1
              loop: start=0, step=1, limit=1
              $region49: #{gat_layer_pallas.3} parent=47 // loop_pre_header
                _
              $region50: #{gat_layer_pallas.3} parent=47 // loop_header
                %s243 = sphi 0, %s247
                %p244 = scmp.ge.s32.totalorder %s243, 1
                %s248 = sphi %s233, %s233
                %s249 = sphi %s228, %s228
              $region51: #{gat_layer_pallas.3} parent=47 // loop_header_branch
                %246 = sbr.rel (%p244) target = $region55
              $region52: #{gat_layer_pallas.3} parent=47 // loop_body
                %v250 = vld [vmem:[%s248] sm:%s241]
                %251 = vst [vmem:[%s249] sm:%s241] %v250
                %v252 = vld [vmem:[%s248 + $0x10] sm:%s241]
                %253 = vst [vmem:[%s249 + $0x8] sm:%s241] %v252
                %v254 = vld [vmem:[%s248 + $0x20] sm:%s241]
                %255 = vst [vmem:[%s249 + $0x10] sm:%s241] %v254
                %v256 = vld [vmem:[%s248 + $0x30] sm:%s241]
                %257 = vst [vmem:[%s249 + $0x18] sm:%s241] %v256
              $region53: #{gat_layer_pallas.3} parent=47 // loop_footer
                %s247 = sadd.s32 1, %s243
              $region54: #{gat_layer_pallas.3} parent=47 // loop_footer_branch
                %242 = sbr.rel target = $region50
              $region55: #{gat_layer_pallas.3} parent=47 // loop_exit
                _
            $region48: #{gat_layer_pallas.3} parent=39 // pred_fallthru
              _
          $region40: #{gat_layer_pallas.3} parent=35 // pred_fallthru
            _
          %278 = vnop
        $region36: #{gat_layer_pallas.3} parent=19 // pred_fallthru
          _
      $region20: #{gat_layer_pallas.3} parent=5 // pred_fallthru
        _
      %p279 = scmp.le.s32.totalorder 1, %s11
      %p280 = scmp.lt.s32.totalorder %s11, 5
      %p281 = pnand %p279, %p280
      %p282 = pneg %p281
      // Predicated region
      $region71: #{gat_layer_pallas.3} parent=5 // pred_check
        _
      $region72: #{gat_layer_pallas.3} parent=5 // pred_check_branch
        %284 = sbr.rel (%p281) target = $region74
      $region73: #{gat_layer_pallas.3} parent=5 // pred_region
        %s285 = ssub.s32 %s11, 1
        %s286 = sand.u32 %s116, 1
        %s287 = sand.u32 %s116, 1
        %s288 = smul.addr %s287, 32
        %s289 = scalar_lea.vmem [#allocation5], %s288
        // Predicated region
        $region75: #{gat_layer_pallas.3} parent=73 // pred_check
          %p290 = pneg %p129
        $region76: #{gat_layer_pallas.3} parent=73 // pred_check_branch
          %292 = sbr.rel (%p290) target = $region78
        $region77: #{gat_layer_pallas.3} parent=73 // pred_region
          _
        $region78: #{gat_layer_pallas.3} parent=73 // pred_fallthru
          _
        %s293 = smul.u32 16, %s20
        %p294 = scmp.lt.s32.totalorder %s293, 31
        %s295 = scalar_select %p294, %s293, 31
        %s296 = smul.addr %s295, 8
        %s297 = scalar_lea.vmem %s0, %s296
        %p298 = pneg %p49
        %p299 = pneg %p46
        %p300 = scmp.lt.s32.totalorder %s21, 1
        %s301 = scalar_select %p300, %s21, 1
        %s302 = scalar_lea.vmem %s1, %s301
        %p303 = pneg %p75
        %p304 = pneg %p72
        %s305 = smul.u32 16, %s21
        %p306 = scmp.lt.s32.totalorder %s305, 31
        %s307 = scalar_select %p306, %s305, 31
        %s308 = smul.addr %s307, 4
        %s309 = scalar_lea.vmem %s2, %s308
        %p310 = pneg %p101
        %p311 = pneg %p98
        %s312 = sand.u32 %s116, 1
        %s313 = sand.u32 %s116, 1
        %s314 = smul.addr %s313, 32
        %s315 = scalar_lea.vmem [#allocation5], %s314
        %p316 = pneg %p129
        %p317 = pneg %p126
        %p318 = pneg %p150
        %p319 = pneg %p147
        %p320 = pneg %p176
        %p321 = pneg %p173
        %s322 = smul.u32 16, %s20
        %p323 = scmp.lt.s32.totalorder %s322, 31
        %s324 = scalar_select %p323, %s322, 31
        %s325 = smul.addr %s324, 8
        %s326 = scalar_lea.vmem %s5, %s325
        %s327 = smul.u32 16, %s20
        %p328 = scmp.lt.s32.totalorder %s327, 31
        %s329 = scalar_select %p328, %s327, 31
        %s330 = smul.addr %s329, 8
        %s331 = scalar_lea.vmem %s0, %s330
        %s332 = smul.u32 16, %s20
        %p333 = scmp.lt.s32.totalorder %s21, 1
        %s334 = scalar_select %p333, %s21, 1
        %s335 = scalar_lea.vmem %s1, %s334
        %s336 = smul.u32 16, %s21
        %p337 = scmp.lt.s32.totalorder %s336, 31
        %s338 = scalar_select %p337, %s336, 31
        %s339 = smul.addr %s338, 4
        %s340 = scalar_lea.vmem %s2, %s339
        %s341 = smul.u32 16, %s21
        %s342 = smul.u32 4, %s20
        %s343 = smul.u32 16, %s20
        %p344 = scmp.lt.s32.totalorder %s343, 31
        %s345 = scalar_select %p344, %s343, 31
        %s346 = smul.addr %s345, 8
        %s347 = scalar_lea.vmem %s5, %s346
        %s348 = smul.u32 16, %s20
        %p350 = scmp.eq.s32.totalorder %s21, 0
        // Predicated region
        $region79: #{gat_layer_pallas.3} parent=73 // pred_check
          %p351 = pneg %p350
        $region80: #{gat_layer_pallas.3} parent=73 // pred_check_branch
          %353 = sbr.rel (%p351) target = $region82
        $region81: #{gat_layer_pallas.3} parent=73 // pred_region
          %vm354 = vcmask 7168
          %355 = vst.msk [vmem:[#allocation2] sm:$0xff] %vm354, -1e+30
          %356 = vst.msk [vmem:[#allocation2 + $0x8] sm:$0xff] %vm354, -1e+30
          %357 = vst.msk [vmem:[#allocation2 + $0x10] sm:$0xff] %vm354, -1e+30
          %358 = vst.msk [vmem:[#allocation2 + $0x18] sm:$0xff] %vm354, -1e+30
          %359 = vst.msk [vmem:[#allocation2 + $0x20] sm:$0xff] %vm354, -1e+30
          %360 = vst.msk [vmem:[#allocation2 + $0x28] sm:$0xff] %vm354, -1e+30
          %361 = vst.msk [vmem:[#allocation2 + $0x30] sm:$0xff] %vm354, -1e+30
          %362 = vst.msk [vmem:[#allocation2 + $0x38] sm:$0xff] %vm354, -1e+30
          %363 = vst.msk [vmem:[#allocation2 + $0x40] sm:$0xff] %vm354, -1e+30
          %364 = vst.msk [vmem:[#allocation2 + $0x48] sm:$0xff] %vm354, -1e+30
          %365 = vst.msk [vmem:[#allocation2 + $0x50] sm:$0xff] %vm354, -1e+30
          %366 = vst.msk [vmem:[#allocation2 + $0x58] sm:$0xff] %vm354, -1e+30
          %367 = vst.msk [vmem:[#allocation2 + $0x60] sm:$0xff] %vm354, -1e+30
          %368 = vst.msk [vmem:[#allocation2 + $0x68] sm:$0xff] %vm354, -1e+30
          %369 = vst.msk [vmem:[#allocation2 + $0x70] sm:$0xff] %vm354, -1e+30
          %370 = vst.msk [vmem:[#allocation2 + $0x78] sm:$0xff] %vm354, -1e+30
          %371 = vst.msk [vmem:[#allocation3] sm:$0xff] %vm354, 0.0
          %372 = vst.msk [vmem:[#allocation3 + $0x8] sm:$0xff] %vm354, 0.0
          %373 = vst.msk [vmem:[#allocation3 + $0x10] sm:$0xff] %vm354, 0.0
          %374 = vst.msk [vmem:[#allocation3 + $0x18] sm:$0xff] %vm354, 0.0
          %375 = vst.msk [vmem:[#allocation3 + $0x20] sm:$0xff] %vm354, 0.0
          %376 = vst.msk [vmem:[#allocation3 + $0x28] sm:$0xff] %vm354, 0.0
          %377 = vst.msk [vmem:[#allocation3 + $0x30] sm:$0xff] %vm354, 0.0
          %378 = vst.msk [vmem:[#allocation3 + $0x38] sm:$0xff] %vm354, 0.0
          %379 = vst.msk [vmem:[#allocation3 + $0x40] sm:$0xff] %vm354, 0.0
          %380 = vst.msk [vmem:[#allocation3 + $0x48] sm:$0xff] %vm354, 0.0
          %381 = vst.msk [vmem:[#allocation3 + $0x50] sm:$0xff] %vm354, 0.0
          %382 = vst.msk [vmem:[#allocation3 + $0x58] sm:$0xff] %vm354, 0.0
          %383 = vst.msk [vmem:[#allocation3 + $0x60] sm:$0xff] %vm354, 0.0
          %384 = vst.msk [vmem:[#allocation3 + $0x68] sm:$0xff] %vm354, 0.0
          %385 = vst.msk [vmem:[#allocation3 + $0x70] sm:$0xff] %vm354, 0.0
          %386 = vst.msk [vmem:[#allocation3 + $0x78] sm:$0xff] %vm354, 0.0
          %vm387 = vcmask 261120
          %388 = vst.msk [vmem:[#allocation4] sm:$0xff] %vm387, 0.0
          %389 = vst.msk [vmem:[#allocation4 + $0x8] sm:$0xff] %vm387, 0.0
          %390 = vst.msk [vmem:[#allocation4 + $0x10] sm:$0xff] %vm387, 0.0
          %391 = vst.msk [vmem:[#allocation4 + $0x18] sm:$0xff] %vm387, 0.0
          %392 = vst.msk [vmem:[#allocation4 + $0x20] sm:$0xff] %vm387, 0.0
          %393 = vst.msk [vmem:[#allocation4 + $0x28] sm:$0xff] %vm387, 0.0
          %394 = vst.msk [vmem:[#allocation4 + $0x30] sm:$0xff] %vm387, 0.0
          %395 = vst.msk [vmem:[#allocation4 + $0x38] sm:$0xff] %vm387, 0.0
          %396 = vst.msk [vmem:[#allocation4 + $0x40] sm:$0xff] %vm387, 0.0
          %397 = vst.msk [vmem:[#allocation4 + $0x48] sm:$0xff] %vm387, 0.0
          %398 = vst.msk [vmem:[#allocation4 + $0x50] sm:$0xff] %vm387, 0.0
          %399 = vst.msk [vmem:[#allocation4 + $0x58] sm:$0xff] %vm387, 0.0
          %400 = vst.msk [vmem:[#allocation4 + $0x60] sm:$0xff] %vm387, 0.0
          %401 = vst.msk [vmem:[#allocation4 + $0x68] sm:$0xff] %vm387, 0.0
          %402 = vst.msk [vmem:[#allocation4 + $0x70] sm:$0xff] %vm387, 0.0
          %403 = vst.msk [vmem:[#allocation4 + $0x78] sm:$0xff] %vm387, 0.0
        $region82: #{gat_layer_pallas.3} parent=73 // pred_fallthru
          _
        %v404 = vld [vmem:[%s289] sm:$0xff]
        %v405 = vld [vmem:[%s289 + $0x8] sm:$0xff]
        %v406 = vld [vmem:[%s289 + $0x10] sm:$0xff]
        %v407 = vld [vmem:[%s289 + $0x18] sm:$0xff]
        %v408 = vunpack.c.0.s8 %v404
        %v409 = vunpack.c.1.s8 %v404
        %v410 = vunpack.c.2.s8 %v404
        %v411 = vunpack.c.3.s8 %v404
        %v412 = vunpack.c.0.s8 %v405
        %v413 = vunpack.c.1.s8 %v405
        %v414 = vunpack.c.2.s8 %v405
        %v415 = vunpack.c.3.s8 %v405
        %v416 = vunpack.c.0.s8 %v406
        %v417 = vunpack.c.1.s8 %v406
        %v418 = vunpack.c.2.s8 %v406
        %v419 = vunpack.c.3.s8 %v406
        %v420 = vunpack.c.0.s8 %v407
        %v421 = vunpack.c.1.s8 %v407
        %v422 = vunpack.c.2.s8 %v407
        %v423 = vunpack.c.3.s8 %v407
        %vm424 = vcmp.ne.s32.totalorder %v408, 0
        %vm425 = vcmp.ne.s32.totalorder %v409, 0
        %vm426 = vcmp.ne.s32.totalorder %v410, 0
        %vm427 = vcmp.ne.s32.totalorder %v411, 0
        %vm428 = vcmp.ne.s32.totalorder %v412, 0
        %vm429 = vcmp.ne.s32.totalorder %v413, 0
        %vm430 = vcmp.ne.s32.totalorder %v414, 0
        %vm431 = vcmp.ne.s32.totalorder %v415, 0
        %vm432 = vcmp.ne.s32.totalorder %v416, 0
        %vm433 = vcmp.ne.s32.totalorder %v417, 0
        %vm434 = vcmp.ne.s32.totalorder %v418, 0
        %vm435 = vcmp.ne.s32.totalorder %v419, 0
        %vm436 = vcmp.ne.s32.totalorder %v420, 0
        %vm437 = vcmp.ne.s32.totalorder %v421, 0
        %vm438 = vcmp.ne.s32.totalorder %v422, 0
        %vm439 = vcmp.ne.s32.totalorder %v423, 0
        %v440 = vld [vmem:[%s331] sm:$0xff]
        %v441 = vld [vmem:[%s331 + $0x8] sm:$0xff]
        %v442 = vld [vmem:[%s331 + $0x10] sm:$0xff]
        %v443 = vld [vmem:[%s331 + $0x18] sm:$0xff]
        %v444 = vld [vmem:[%s331 + $0x20] sm:$0xff]
        %v445 = vld [vmem:[%s331 + $0x28] sm:$0xff]
        %v446 = vld [vmem:[%s331 + $0x30] sm:$0xff]
        %v447 = vld [vmem:[%s331 + $0x38] sm:$0xff]
        %v448 = vld [vmem:[%s331 + $0x40] sm:$0xff]
        %v449 = vld [vmem:[%s331 + $0x48] sm:$0xff]
        %v450 = vld [vmem:[%s331 + $0x50] sm:$0xff]
        %v451 = vld [vmem:[%s331 + $0x58] sm:$0xff]
        %v452 = vld [vmem:[%s331 + $0x60] sm:$0xff]
        %v453 = vld [vmem:[%s331 + $0x68] sm:$0xff]
        %v454 = vld [vmem:[%s331 + $0x70] sm:$0xff]
        %v455 = vld [vmem:[%s331 + $0x78] sm:$0xff]
        %v456 = vld [vmem:[%s335] sm:$0x1]
        %458 = vset.pattern.permute.xlu0 0
        %459 = vperm.xlu0 %458, %v440
        %v460 = vpop.permute.xlu0 %459
        %463 = vset.pattern.permute.xlu0 0
        %464 = vperm.xlu0 %463, %v441
        %v465 = vpop.permute.xlu0 %464
        %468 = vset.pattern.permute.xlu0 0
        %469 = vperm.xlu0 %468, %v442
        %v470 = vpop.permute.xlu0 %469
        %473 = vset.pattern.permute.xlu0 0
        %474 = vperm.xlu0 %473, %v443
        %v475 = vpop.permute.xlu0 %474
        %478 = vset.pattern.permute.xlu0 0
        %479 = vperm.xlu0 %478, %v444
        %v480 = vpop.permute.xlu0 %479
        %483 = vset.pattern.permute.xlu0 0
        %484 = vperm.xlu0 %483, %v445
        %v485 = vpop.permute.xlu0 %484
        %488 = vset.pattern.permute.xlu0 0
        %489 = vperm.xlu0 %488, %v446
        %v490 = vpop.permute.xlu0 %489
        %493 = vset.pattern.permute.xlu0 0
        %494 = vperm.xlu0 %493, %v447
        %v495 = vpop.permute.xlu0 %494
        %498 = vset.pattern.permute.xlu0 0
        %499 = vperm.xlu0 %498, %v448
        %v500 = vpop.permute.xlu0 %499
        %503 = vset.pattern.permute.xlu0 0
        %504 = vperm.xlu0 %503, %v449
        %v505 = vpop.permute.xlu0 %504
        %508 = vset.pattern.permute.xlu0 0
        %509 = vperm.xlu0 %508, %v450
        %v510 = vpop.permute.xlu0 %509
        %513 = vset.pattern.permute.xlu0 0
        %514 = vperm.xlu0 %513, %v451
        %v515 = vpop.permute.xlu0 %514
        %518 = vset.pattern.permute.xlu0 0
        %519 = vperm.xlu0 %518, %v452
        %v520 = vpop.permute.xlu0 %519
        %523 = vset.pattern.permute.xlu0 0
        %524 = vperm.xlu0 %523, %v453
        %v525 = vpop.permute.xlu0 %524
        %528 = vset.pattern.permute.xlu0 0
        %529 = vperm.xlu0 %528, %v454
        %v530 = vpop.permute.xlu0 %529
        %533 = vset.pattern.permute.xlu0 0
        %534 = vperm.xlu0 %533, %v455
        %v535 = vpop.permute.xlu0 %534
        %v538 = vlaneseq
        %v539 = vshrl.u32 %v538, 7
        %v540 = vsub.s32 0, %v539
        %v541 = vrot.slane %v456, %v540
        %v543 = vadd.f32 %v460, %v541
        %v544 = vadd.f32 %v465, %v541
        %v545 = vadd.f32 %v470, %v541
        %v546 = vadd.f32 %v475, %v541
        %v547 = vadd.f32 %v480, %v541
        %v548 = vadd.f32 %v485, %v541
        %v549 = vadd.f32 %v490, %v541
        %v550 = vadd.f32 %v495, %v541
        %v551 = vadd.f32 %v500, %v541
        %v552 = vadd.f32 %v505, %v541
        %v553 = vadd.f32 %v510, %v541
        %v554 = vadd.f32 %v515, %v541
        %v555 = vadd.f32 %v520, %v541
        %v556 = vadd.f32 %v525, %v541
        %v557 = vadd.f32 %v530, %v541
        %v558 = vadd.f32 %v535, %v541
        %vm559 = vcmp.gt.f32.partialorder %v543, 0.0
        %vm560 = vcmp.gt.f32.partialorder %v544, 0.0
        %vm561 = vcmp.gt.f32.partialorder %v545, 0.0
        %vm562 = vcmp.gt.f32.partialorder %v546, 0.0
        %vm563 = vcmp.gt.f32.partialorder %v547, 0.0
        %vm564 = vcmp.gt.f32.partialorder %v548, 0.0
        %vm565 = vcmp.gt.f32.partialorder %v549, 0.0
        %vm566 = vcmp.gt.f32.partialorder %v550, 0.0
        %vm567 = vcmp.gt.f32.partialorder %v551, 0.0
        %vm568 = vcmp.gt.f32.partialorder %v552, 0.0
        %vm569 = vcmp.gt.f32.partialorder %v553, 0.0
        %vm570 = vcmp.gt.f32.partialorder %v554, 0.0
        %vm571 = vcmp.gt.f32.partialorder %v555, 0.0
        %vm572 = vcmp.gt.f32.partialorder %v556, 0.0
        %vm573 = vcmp.gt.f32.partialorder %v557, 0.0
        %vm574 = vcmp.gt.f32.partialorder %v558, 0.0
        %v575 = vmul.f32 %v543, 0.2
        %v576 = vmul.f32 %v544, 0.2
        %v577 = vmul.f32 %v545, 0.2
        %v578 = vmul.f32 %v546, 0.2
        %v579 = vmul.f32 %v547, 0.2
        %v580 = vmul.f32 %v548, 0.2
        %v581 = vmul.f32 %v549, 0.2
        %v582 = vmul.f32 %v550, 0.2
        %v583 = vmul.f32 %v551, 0.2
        %v584 = vmul.f32 %v552, 0.2
        %v585 = vmul.f32 %v553, 0.2
        %v586 = vmul.f32 %v554, 0.2
        %v587 = vmul.f32 %v555, 0.2
        %v588 = vmul.f32 %v556, 0.2
        %v589 = vmul.f32 %v557, 0.2
        %v590 = vmul.f32 %v558, 0.2
        %v591 = vsel %vm559, %v543, %v575
        %v592 = vsel %vm560, %v544, %v576
        %v593 = vsel %vm561, %v545, %v577
        %v594 = vsel %vm562, %v546, %v578
        %v595 = vsel %vm563, %v547, %v579
        %v596 = vsel %vm564, %v548, %v580
        %v597 = vsel %vm565, %v549, %v581
        %v598 = vsel %vm566, %v550, %v582
        %v599 = vsel %vm567, %v551, %v583
        %v600 = vsel %vm568, %v552, %v584
        %v601 = vsel %vm569, %v553, %v585
        %v602 = vsel %vm570, %v554, %v586
        %v603 = vsel %vm571, %v555, %v587
        %v604 = vsel %vm572, %v556, %v588
        %v605 = vsel %vm573, %v557, %v589
        %v606 = vsel %vm574, %v558, %v590
        %v607 = vsel %vm424, %v591, -1e+30
        %v608 = vsel %vm425, %v592, -1e+30
        %v609 = vsel %vm426, %v593, -1e+30
        %v610 = vsel %vm427, %v594, -1e+30
        %v611 = vsel %vm428, %v595, -1e+30
        %v612 = vsel %vm429, %v596, -1e+30
        %v613 = vsel %vm430, %v597, -1e+30
        %v614 = vsel %vm431, %v598, -1e+30
        %v615 = vsel %vm432, %v599, -1e+30
        %v616 = vsel %vm433, %v600, -1e+30
        %v617 = vsel %vm434, %v601, -1e+30
        %v618 = vsel %vm435, %v602, -1e+30
        %v619 = vsel %vm436, %v603, -1e+30
        %v620 = vsel %vm437, %v604, -1e+30
        %v621 = vsel %vm438, %v605, -1e+30
        %v622 = vsel %vm439, %v606, -1e+30
        %v623 = vld [vmem:[#allocation2] sm:$0xff]
        %v624 = vld [vmem:[#allocation2 + $0x8] sm:$0xff]
        %v625 = vld [vmem:[#allocation2 + $0x10] sm:$0xff]
        %v626 = vld [vmem:[#allocation2 + $0x18] sm:$0xff]
        %v627 = vld [vmem:[#allocation2 + $0x20] sm:$0xff]
        %v628 = vld [vmem:[#allocation2 + $0x28] sm:$0xff]
        %v629 = vld [vmem:[#allocation2 + $0x30] sm:$0xff]
        %v630 = vld [vmem:[#allocation2 + $0x38] sm:$0xff]
        %v631 = vld [vmem:[#allocation2 + $0x40] sm:$0xff]
        %v632 = vld [vmem:[#allocation2 + $0x48] sm:$0xff]
        %v633 = vld [vmem:[#allocation2 + $0x50] sm:$0xff]
        %v634 = vld [vmem:[#allocation2 + $0x58] sm:$0xff]
        %v635 = vld [vmem:[#allocation2 + $0x60] sm:$0xff]
        %v636 = vld [vmem:[#allocation2 + $0x68] sm:$0xff]
        %v637 = vld [vmem:[#allocation2 + $0x70] sm:$0xff]
        %v638 = vld [vmem:[#allocation2 + $0x78] sm:$0xff]
        %639 = vmax.xlane.f32.xlu0 %v607
        %v640 = vpop.xlane.xlu0 %639
        %641 = vmax.xlane.f32.xlu0 %v608
        %v642 = vpop.xlane.xlu0 %641
        %643 = vmax.xlane.f32.xlu0 %v609
        %v644 = vpop.xlane.xlu0 %643
        %645 = vmax.xlane.f32.xlu0 %v610
        %v646 = vpop.xlane.xlu0 %645
        %647 = vmax.xlane.f32.xlu0 %v611
        %v648 = vpop.xlane.xlu0 %647
        %649 = vmax.xlane.f32.xlu0 %v612
        %v650 = vpop.xlane.xlu0 %649
        %651 = vmax.xlane.f32.xlu0 %v613
        %v652 = vpop.xlane.xlu0 %651
        %653 = vmax.xlane.f32.xlu0 %v614
        %v654 = vpop.xlane.xlu0 %653
        %655 = vmax.xlane.f32.xlu0 %v615
        %v656 = vpop.xlane.xlu0 %655
        %657 = vmax.xlane.f32.xlu0 %v616
        %v658 = vpop.xlane.xlu0 %657
        %659 = vmax.xlane.f32.xlu0 %v617
        %v660 = vpop.xlane.xlu0 %659
        %661 = vmax.xlane.f32.xlu0 %v618
        %v662 = vpop.xlane.xlu0 %661
        %663 = vmax.xlane.f32.xlu0 %v619
        %v664 = vpop.xlane.xlu0 %663
        %665 = vmax.xlane.f32.xlu0 %v620
        %v666 = vpop.xlane.xlu0 %665
        %667 = vmax.xlane.f32.xlu0 %v621
        %v668 = vpop.xlane.xlu0 %667
        %669 = vmax.xlane.f32.xlu0 %v622
        %v670 = vpop.xlane.xlu0 %669
        %v671 = vmax.f32 %v623, %v640
        %v672 = vmax.f32 %v624, %v642
        %v673 = vmax.f32 %v625, %v644
        %v674 = vmax.f32 %v626, %v646
        %v675 = vmax.f32 %v627, %v648
        %v676 = vmax.f32 %v628, %v650
        %v677 = vmax.f32 %v629, %v652
        %v678 = vmax.f32 %v630, %v654
        %v679 = vmax.f32 %v631, %v656
        %v680 = vmax.f32 %v632, %v658
        %v681 = vmax.f32 %v633, %v660
        %v682 = vmax.f32 %v634, %v662
        %v683 = vmax.f32 %v635, %v664
        %v684 = vmax.f32 %v636, %v666
        %v685 = vmax.f32 %v637, %v668
        %v686 = vmax.f32 %v638, %v670
        %v687 = vsub.f32 %v623, %v671
        %v688 = vsub.f32 %v624, %v672
        %v689 = vsub.f32 %v625, %v673
        %v690 = vsub.f32 %v626, %v674
        %v691 = vsub.f32 %v627, %v675
        %v692 = vsub.f32 %v628, %v676
        %v693 = vsub.f32 %v629, %v677
        %v694 = vsub.f32 %v630, %v678
        %v695 = vsub.f32 %v631, %v679
        %v696 = vsub.f32 %v632, %v680
        %v697 = vsub.f32 %v633, %v681
        %v698 = vsub.f32 %v634, %v682
        %v699 = vsub.f32 %v635, %v683
        %v700 = vsub.f32 %v636, %v684
        %v701 = vsub.f32 %v637, %v685
        %v702 = vsub.f32 %v638, %v686
        %v703 = vmul.f32 %v687, 1.442695
        %v704 = vpow.pop %v703
        %v705 = vmul.f32 %v688, 1.442695
        %v706 = vpow.pop %v705
        %v707 = vmul.f32 %v689, 1.442695
        %v708 = vpow.pop %v707
        %v709 = vmul.f32 %v690, 1.442695
        %v710 = vpow.pop %v709
        %v711 = vmul.f32 %v691, 1.442695
        %v712 = vpow.pop %v711
        %v713 = vmul.f32 %v692, 1.442695
        %v714 = vpow.pop %v713
        %v715 = vmul.f32 %v693, 1.442695
        %v716 = vpow.pop %v715
        %v717 = vmul.f32 %v694, 1.442695
        %v718 = vpow.pop %v717
        %v719 = vmul.f32 %v695, 1.442695
        %v720 = vpow.pop %v719
        %v721 = vmul.f32 %v696, 1.442695
        %v722 = vpow.pop %v721
        %v723 = vmul.f32 %v697, 1.442695
        %v724 = vpow.pop %v723
        %v725 = vmul.f32 %v698, 1.442695
        %v726 = vpow.pop %v725
        %v727 = vmul.f32 %v699, 1.442695
        %v728 = vpow.pop %v727
        %v729 = vmul.f32 %v700, 1.442695
        %v730 = vpow.pop %v729
        %v731 = vmul.f32 %v701, 1.442695
        %v732 = vpow.pop %v731
        %v733 = vmul.f32 %v702, 1.442695
        %v734 = vpow.pop %v733
        %736 = vset.pattern.permute.xlu0 0
        %737 = vperm.xlu0 %736, %v671
        %v738 = vpop.permute.xlu0 %737
        %741 = vset.pattern.permute.xlu0 0
        %742 = vperm.xlu0 %741, %v672
        %v743 = vpop.permute.xlu0 %742
        %746 = vset.pattern.permute.xlu0 0
        %747 = vperm.xlu0 %746, %v673
        %v748 = vpop.permute.xlu0 %747
        %751 = vset.pattern.permute.xlu0 0
        %752 = vperm.xlu0 %751, %v674
        %v753 = vpop.permute.xlu0 %752
        %756 = vset.pattern.permute.xlu0 0
        %757 = vperm.xlu0 %756, %v675
        %v758 = vpop.permute.xlu0 %757
        %761 = vset.pattern.permute.xlu0 0
        %762 = vperm.xlu0 %761, %v676
        %v763 = vpop.permute.xlu0 %762
        %766 = vset.pattern.permute.xlu0 0
        %767 = vperm.xlu0 %766, %v677
        %v768 = vpop.permute.xlu0 %767
        %771 = vset.pattern.permute.xlu0 0
        %772 = vperm.xlu0 %771, %v678
        %v773 = vpop.permute.xlu0 %772
        %776 = vset.pattern.permute.xlu0 0
        %777 = vperm.xlu0 %776, %v679
        %v778 = vpop.permute.xlu0 %777
        %781 = vset.pattern.permute.xlu0 0
        %782 = vperm.xlu0 %781, %v680
        %v783 = vpop.permute.xlu0 %782
        %786 = vset.pattern.permute.xlu0 0
        %787 = vperm.xlu0 %786, %v681
        %v788 = vpop.permute.xlu0 %787
        %791 = vset.pattern.permute.xlu0 0
        %792 = vperm.xlu0 %791, %v682
        %v793 = vpop.permute.xlu0 %792
        %796 = vset.pattern.permute.xlu0 0
        %797 = vperm.xlu0 %796, %v683
        %v798 = vpop.permute.xlu0 %797
        %801 = vset.pattern.permute.xlu0 0
        %802 = vperm.xlu0 %801, %v684
        %v803 = vpop.permute.xlu0 %802
        %806 = vset.pattern.permute.xlu0 0
        %807 = vperm.xlu0 %806, %v685
        %v808 = vpop.permute.xlu0 %807
        %811 = vset.pattern.permute.xlu0 0
        %812 = vperm.xlu0 %811, %v686
        %v813 = vpop.permute.xlu0 %812
        %v815 = vsub.f32 %v607, %v738
        %v816 = vsub.f32 %v608, %v743
        %v817 = vsub.f32 %v609, %v748
        %v818 = vsub.f32 %v610, %v753
        %v819 = vsub.f32 %v611, %v758
        %v820 = vsub.f32 %v612, %v763
        %v821 = vsub.f32 %v613, %v768
        %v822 = vsub.f32 %v614, %v773
        %v823 = vsub.f32 %v615, %v778
        %v824 = vsub.f32 %v616, %v783
        %v825 = vsub.f32 %v617, %v788
        %v826 = vsub.f32 %v618, %v793
        %v827 = vsub.f32 %v619, %v798
        %v828 = vsub.f32 %v620, %v803
        %v829 = vsub.f32 %v621, %v808
        %v830 = vsub.f32 %v622, %v813
        %v831 = vmul.f32 %v815, 1.442695
        %v832 = vpow.pop %v831
        %v833 = vmul.f32 %v816, 1.442695
        %v834 = vpow.pop %v833
        %v835 = vmul.f32 %v817, 1.442695
        %v836 = vpow.pop %v835
        %v837 = vmul.f32 %v818, 1.442695
        %v838 = vpow.pop %v837
        %v839 = vmul.f32 %v819, 1.442695
        %v840 = vpow.pop %v839
        %v841 = vmul.f32 %v820, 1.442695
        %v842 = vpow.pop %v841
        %v843 = vmul.f32 %v821, 1.442695
        %v844 = vpow.pop %v843
        %v845 = vmul.f32 %v822, 1.442695
        %v846 = vpow.pop %v845
        %v847 = vmul.f32 %v823, 1.442695
        %v848 = vpow.pop %v847
        %v849 = vmul.f32 %v824, 1.442695
        %v850 = vpow.pop %v849
        %v851 = vmul.f32 %v825, 1.442695
        %v852 = vpow.pop %v851
        %v853 = vmul.f32 %v826, 1.442695
        %v854 = vpow.pop %v853
        %v855 = vmul.f32 %v827, 1.442695
        %v856 = vpow.pop %v855
        %v857 = vmul.f32 %v828, 1.442695
        %v858 = vpow.pop %v857
        %v859 = vmul.f32 %v829, 1.442695
        %v860 = vpow.pop %v859
        %v861 = vmul.f32 %v830, 1.442695
        %v862 = vpow.pop %v861
        %v863 = vld [vmem:[#allocation3] sm:$0xff]
        %v864 = vld [vmem:[#allocation3 + $0x8] sm:$0xff]
        %v865 = vld [vmem:[#allocation3 + $0x10] sm:$0xff]
        %v866 = vld [vmem:[#allocation3 + $0x18] sm:$0xff]
        %v867 = vld [vmem:[#allocation3 + $0x20] sm:$0xff]
        %v868 = vld [vmem:[#allocation3 + $0x28] sm:$0xff]
        %v869 = vld [vmem:[#allocation3 + $0x30] sm:$0xff]
        %v870 = vld [vmem:[#allocation3 + $0x38] sm:$0xff]
        %v871 = vld [vmem:[#allocation3 + $0x40] sm:$0xff]
        %v872 = vld [vmem:[#allocation3 + $0x48] sm:$0xff]
        %v873 = vld [vmem:[#allocation3 + $0x50] sm:$0xff]
        %v874 = vld [vmem:[#allocation3 + $0x58] sm:$0xff]
        %v875 = vld [vmem:[#allocation3 + $0x60] sm:$0xff]
        %v876 = vld [vmem:[#allocation3 + $0x68] sm:$0xff]
        %v877 = vld [vmem:[#allocation3 + $0x70] sm:$0xff]
        %v878 = vld [vmem:[#allocation3 + $0x78] sm:$0xff]
        %v879 = vmul.f32 %v704, %v863
        %v880 = vmul.f32 %v706, %v864
        %v881 = vmul.f32 %v708, %v865
        %v882 = vmul.f32 %v710, %v866
        %v883 = vmul.f32 %v712, %v867
        %v884 = vmul.f32 %v714, %v868
        %v885 = vmul.f32 %v716, %v869
        %v886 = vmul.f32 %v718, %v870
        %v887 = vmul.f32 %v720, %v871
        %v888 = vmul.f32 %v722, %v872
        %v889 = vmul.f32 %v724, %v873
        %v890 = vmul.f32 %v726, %v874
        %v891 = vmul.f32 %v728, %v875
        %v892 = vmul.f32 %v730, %v876
        %v893 = vmul.f32 %v732, %v877
        %v894 = vmul.f32 %v734, %v878
        %895 = vadd.xlane.f32.xlu0 %v832
        %v896 = vpop.xlane.xlu0 %895
        %897 = vadd.xlane.f32.xlu0 %v834
        %v898 = vpop.xlane.xlu0 %897
        %899 = vadd.xlane.f32.xlu0 %v836
        %v900 = vpop.xlane.xlu0 %899
        %901 = vadd.xlane.f32.xlu0 %v838
        %v902 = vpop.xlane.xlu0 %901
        %903 = vadd.xlane.f32.xlu0 %v840
        %v904 = vpop.xlane.xlu0 %903
        %905 = vadd.xlane.f32.xlu0 %v842
        %v906 = vpop.xlane.xlu0 %905
        %907 = vadd.xlane.f32.xlu0 %v844
        %v908 = vpop.xlane.xlu0 %907
        %909 = vadd.xlane.f32.xlu0 %v846
        %v910 = vpop.xlane.xlu0 %909
        %911 = vadd.xlane.f32.xlu0 %v848
        %v912 = vpop.xlane.xlu0 %911
        %913 = vadd.xlane.f32.xlu0 %v850
        %v914 = vpop.xlane.xlu0 %913
        %915 = vadd.xlane.f32.xlu0 %v852
        %v916 = vpop.xlane.xlu0 %915
        %917 = vadd.xlane.f32.xlu0 %v854
        %v918 = vpop.xlane.xlu0 %917
        %919 = vadd.xlane.f32.xlu0 %v856
        %v920 = vpop.xlane.xlu0 %919
        %921 = vadd.xlane.f32.xlu0 %v858
        %v922 = vpop.xlane.xlu0 %921
        %923 = vadd.xlane.f32.xlu0 %v860
        %v924 = vpop.xlane.xlu0 %923
        %925 = vadd.xlane.f32.xlu0 %v862
        %v926 = vpop.xlane.xlu0 %925
        %v927 = vadd.f32 %v879, %v896
        %v928 = vadd.f32 %v880, %v898
        %v929 = vadd.f32 %v881, %v900
        %v930 = vadd.f32 %v882, %v902
        %v931 = vadd.f32 %v883, %v904
        %v932 = vadd.f32 %v884, %v906
        %v933 = vadd.f32 %v885, %v908
        %v934 = vadd.f32 %v886, %v910
        %v935 = vadd.f32 %v887, %v912
        %v936 = vadd.f32 %v888, %v914
        %v937 = vadd.f32 %v889, %v916
        %v938 = vadd.f32 %v890, %v918
        %v939 = vadd.f32 %v891, %v920
        %v940 = vadd.f32 %v892, %v922
        %v941 = vadd.f32 %v893, %v924
        %v942 = vadd.f32 %v894, %v926
        %vm943 = vcmask 7168
        %944 = vst.msk [vmem:[#allocation3] sm:$0xff] %vm943, %v927
        %945 = vst.msk [vmem:[#allocation3 + $0x8] sm:$0xff] %vm943, %v928
        %946 = vst.msk [vmem:[#allocation3 + $0x10] sm:$0xff] %vm943, %v929
        %947 = vst.msk [vmem:[#allocation3 + $0x18] sm:$0xff] %vm943, %v930
        %948 = vst.msk [vmem:[#allocation3 + $0x20] sm:$0xff] %vm943, %v931
        %949 = vst.msk [vmem:[#allocation3 + $0x28] sm:$0xff] %vm943, %v932
        %950 = vst.msk [vmem:[#allocation3 + $0x30] sm:$0xff] %vm943, %v933
        %951 = vst.msk [vmem:[#allocation3 + $0x38] sm:$0xff] %vm943, %v934
        %952 = vst.msk [vmem:[#allocation3 + $0x40] sm:$0xff] %vm943, %v935
        %953 = vst.msk [vmem:[#allocation3 + $0x48] sm:$0xff] %vm943, %v936
        %954 = vst.msk [vmem:[#allocation3 + $0x50] sm:$0xff] %vm943, %v937
        %955 = vst.msk [vmem:[#allocation3 + $0x58] sm:$0xff] %vm943, %v938
        %956 = vst.msk [vmem:[#allocation3 + $0x60] sm:$0xff] %vm943, %v939
        %957 = vst.msk [vmem:[#allocation3 + $0x68] sm:$0xff] %vm943, %v940
        %958 = vst.msk [vmem:[#allocation3 + $0x70] sm:$0xff] %vm943, %v941
        %959 = vst.msk [vmem:[#allocation3 + $0x78] sm:$0xff] %vm943, %v942
        %v960 = vld [vmem:[#allocation4] sm:$0xff]
        %v961 = vld [vmem:[#allocation4 + $0x8] sm:$0xff]
        %v962 = vld [vmem:[#allocation4 + $0x10] sm:$0xff]
        %v963 = vld [vmem:[#allocation4 + $0x18] sm:$0xff]
        %v964 = vld [vmem:[#allocation4 + $0x20] sm:$0xff]
        %v965 = vld [vmem:[#allocation4 + $0x28] sm:$0xff]
        %v966 = vld [vmem:[#allocation4 + $0x30] sm:$0xff]
        %v967 = vld [vmem:[#allocation4 + $0x38] sm:$0xff]
        %v968 = vld [vmem:[#allocation4 + $0x40] sm:$0xff]
        %v969 = vld [vmem:[#allocation4 + $0x48] sm:$0xff]
        %v970 = vld [vmem:[#allocation4 + $0x50] sm:$0xff]
        %v971 = vld [vmem:[#allocation4 + $0x58] sm:$0xff]
        %v972 = vld [vmem:[#allocation4 + $0x60] sm:$0xff]
        %v973 = vld [vmem:[#allocation4 + $0x68] sm:$0xff]
        %v974 = vld [vmem:[#allocation4 + $0x70] sm:$0xff]
        %v975 = vld [vmem:[#allocation4 + $0x78] sm:$0xff]
        %977 = vset.pattern.permute.xlu0 0
        %978 = vperm.xlu0 %977, %v704
        %v979 = vpop.permute.xlu0 %978
        %982 = vset.pattern.permute.xlu0 0
        %983 = vperm.xlu0 %982, %v706
        %v984 = vpop.permute.xlu0 %983
        %987 = vset.pattern.permute.xlu0 0
        %988 = vperm.xlu0 %987, %v708
        %v989 = vpop.permute.xlu0 %988
        %992 = vset.pattern.permute.xlu0 0
        %993 = vperm.xlu0 %992, %v710
        %v994 = vpop.permute.xlu0 %993
        %997 = vset.pattern.permute.xlu0 0
        %998 = vperm.xlu0 %997, %v712
        %v999 = vpop.permute.xlu0 %998
        %1002 = vset.pattern.permute.xlu0 0
        %1003 = vperm.xlu0 %1002, %v714
        %v1004 = vpop.permute.xlu0 %1003
        %1007 = vset.pattern.permute.xlu0 0
        %1008 = vperm.xlu0 %1007, %v716
        %v1009 = vpop.permute.xlu0 %1008
        %1012 = vset.pattern.permute.xlu0 0
        %1013 = vperm.xlu0 %1012, %v718
        %v1014 = vpop.permute.xlu0 %1013
        %1017 = vset.pattern.permute.xlu0 0
        %1018 = vperm.xlu0 %1017, %v720
        %v1019 = vpop.permute.xlu0 %1018
        %1022 = vset.pattern.permute.xlu0 0
        %1023 = vperm.xlu0 %1022, %v722
        %v1024 = vpop.permute.xlu0 %1023
        %1027 = vset.pattern.permute.xlu0 0
        %1028 = vperm.xlu0 %1027, %v724
        %v1029 = vpop.permute.xlu0 %1028
        %1032 = vset.pattern.permute.xlu0 0
        %1033 = vperm.xlu0 %1032, %v726
        %v1034 = vpop.permute.xlu0 %1033
        %1037 = vset.pattern.permute.xlu0 0
        %1038 = vperm.xlu0 %1037, %v728
        %v1039 = vpop.permute.xlu0 %1038
        %1042 = vset.pattern.permute.xlu0 0
        %1043 = vperm.xlu0 %1042, %v730
        %v1044 = vpop.permute.xlu0 %1043
        %1047 = vset.pattern.permute.xlu0 0
        %1048 = vperm.xlu0 %1047, %v732
        %v1049 = vpop.permute.xlu0 %1048
        %1052 = vset.pattern.permute.xlu0 0
        %1053 = vperm.xlu0 %1052, %v734
        %v1054 = vpop.permute.xlu0 %1053
        %v1056 = vmul.f32 %v979, %v960
        %v1057 = vmul.f32 %v984, %v961
        %v1058 = vmul.f32 %v989, %v962
        %v1059 = vmul.f32 %v994, %v963
        %v1060 = vmul.f32 %v999, %v964
        %v1061 = vmul.f32 %v1004, %v965
        %v1062 = vmul.f32 %v1009, %v966
        %v1063 = vmul.f32 %v1014, %v967
        %v1064 = vmul.f32 %v1019, %v968
        %v1065 = vmul.f32 %v1024, %v969
        %v1066 = vmul.f32 %v1029, %v970
        %v1067 = vmul.f32 %v1034, %v971
        %v1068 = vmul.f32 %v1039, %v972
        %v1069 = vmul.f32 %v1044, %v973
        %v1070 = vmul.f32 %v1049, %v974
        %v1071 = vmul.f32 %v1054, %v975
        %v1072 = vpack.c.bf16 %v834, %v832
        %v1073 = vpack.c.bf16 %v838, %v836
        %v1074 = vpack.c.bf16 %v842, %v840
        %v1075 = vpack.c.bf16 %v846, %v844
        %v1076 = vpack.c.bf16 %v850, %v848
        %v1077 = vpack.c.bf16 %v854, %v852
        %v1078 = vpack.c.bf16 %v858, %v856
        %v1079 = vpack.c.bf16 %v862, %v860
        %v1080 = vld [vmem:[%s340] sm:$0xf]
        %v1081 = vld [vmem:[%s340 + $0x4] sm:$0xf]
        %v1082 = vld [vmem:[%s340 + $0x8] sm:$0xf]
        %v1083 = vld [vmem:[%s340 + $0xc] sm:$0xf]
        %v1084 = vld [vmem:[%s340 + $0x10] sm:$0xf]
        %v1085 = vld [vmem:[%s340 + $0x14] sm:$0xf]
        %v1086 = vld [vmem:[%s340 + $0x18] sm:$0xf]
        %v1087 = vld [vmem:[%s340 + $0x1c] sm:$0xf]
        %v1088 = vld [vmem:[%s340 + $0x20] sm:$0xf]
        %v1089 = vld [vmem:[%s340 + $0x24] sm:$0xf]
        %v1090 = vld [vmem:[%s340 + $0x28] sm:$0xf]
        %v1091 = vld [vmem:[%s340 + $0x2c] sm:$0xf]
        %v1092 = vld [vmem:[%s340 + $0x30] sm:$0xf]
        %v1093 = vld [vmem:[%s340 + $0x34] sm:$0xf]
        %v1094 = vld [vmem:[%s340 + $0x38] sm:$0xf]
        %v1095 = vld [vmem:[%s340 + $0x3c] sm:$0xf]
        %v1112 = vunpack.c.l.b16 %v1080
        %v1113 = vunpack.c.l.b16 %v1081
        %v1114 = vunpack.c.l.b16 %v1082
        %v1115 = vunpack.c.l.b16 %v1083
        %v1116 = vunpack.c.l.b16 %v1084
        %v1117 = vunpack.c.l.b16 %v1085
        %v1118 = vunpack.c.l.b16 %v1086
        %v1119 = vunpack.c.l.b16 %v1087
        %v1120 = vunpack.c.l.b16 %v1088
        %v1121 = vunpack.c.l.b16 %v1089
        %v1122 = vunpack.c.l.b16 %v1090
        %v1123 = vunpack.c.l.b16 %v1091
        %v1124 = vunpack.c.l.b16 %v1092
        %v1125 = vunpack.c.l.b16 %v1093
        %v1126 = vunpack.c.l.b16 %v1094
        %v1127 = vunpack.c.l.b16 %v1095
        %v1128 = vpack.c.b16 %v1113, %v1112
        %v1129 = vpack.c.b16 %v1115, %v1114
        %v1130 = vpack.c.b16 %v1117, %v1116
        %v1131 = vpack.c.b16 %v1119, %v1118
        %v1132 = vpack.c.b16 %v1121, %v1120
        %v1133 = vpack.c.b16 %v1123, %v1122
        %v1134 = vpack.c.b16 %v1125, %v1124
        %v1135 = vpack.c.b16 %v1127, %v1126
        %1144 = vmatprep.subr.bf16.mxu0 0
        %1145 = vmatpush1.bf16.msra.mxu0 %v1135
        %1146 = vmatprep.subr.bf16.mxu0 0
        %1147 = vmatpush1.bf16.msra.mxu0 %v1134
        %1148 = vmatprep.subr.bf16.mxu0 0
        %1149 = vmatpush1.bf16.msra.mxu0 %v1133
        %1150 = vmatprep.subr.bf16.mxu0 0
        %1151 = vmatpush1.bf16.msra.mxu0 %v1132
        %1152 = vmatprep.subr.bf16.mxu0 0
        %1153 = vmatpush1.bf16.msra.mxu0 %v1131
        %1154 = vmatprep.subr.bf16.mxu0 0
        %1155 = vmatpush1.bf16.msra.mxu0 %v1130
        %1156 = vmatprep.subr.bf16.mxu0 0
        %1157 = vmatpush1.bf16.msra.mxu0 %v1129
        %1158 = vmatprep.subr.bf16.mxu0 0
        %1159 = vmatpush1.bf16.msra.mxu0 %v1128
        %1160 = vmatprep.subr.bf16.mxu0 0
        %1161 = vmatpush2.bf16.msra.mxu0 0
        %1162 = vmatprep.subr.bf16.mxu0 0
        %1163 = vmatpush2.bf16.msra.mxu0 0
        %1164 = vmatprep.subr.bf16.mxu0 0
        %1165 = vmatpush2.bf16.msra.mxu0 0
        %1166 = vmatprep.subr.bf16.mxu0 0
        %1167 = vmatpush2.bf16.msra.mxu0 0
        %1168 = vmatprep.subr.bf16.mxu0 0
        %1169 = vmatpush2.bf16.msra.mxu0 0
        %1170 = vmatprep.subr.bf16.mxu0 0
        %1171 = vmatpush2.bf16.msra.mxu0 0
        %1172 = vmatprep.subr.bf16.mxu0 0
        %1173 = vmatpush2.bf16.msra.mxu0 0
        %1174 = vmatprep.subr.bf16.mxu0 0
        %1175 = vmatpush2.bf16.msra.mxu0 0
        %1176 = vmatprep.mubr.bf16.mxu0 0
        %1177 = vmatmul.mubr.bf16.gmra.mxu0 %v1072
        %v1178 = vpop.f32.mrf.mxu0
        %v1179 = vadd.f32 0.0, %v1178
        %v1180 = vpop.f32.mrf.mxu0
        %v1181 = vpop.f32.mrf.mxu0
        %v1182 = vadd.f32 0.0, %v1181
        %v1183 = vpop.f32.mrf.mxu0
        %1184 = vmatprep.mubr.bf16.mxu0 0
        %1185 = vmatmul.mubr.bf16.gmra.mxu0 %v1073
        %v1186 = vpop.f32.mrf.mxu0
        %v1187 = vadd.f32 0.0, %v1186
        %v1188 = vpop.f32.mrf.mxu0
        %v1189 = vpop.f32.mrf.mxu0
        %v1190 = vadd.f32 0.0, %v1189
        %v1191 = vpop.f32.mrf.mxu0
        %1192 = vmatprep.mubr.bf16.mxu0 0
        %1193 = vmatmul.mubr.bf16.gmra.mxu0 %v1074
        %v1194 = vpop.f32.mrf.mxu0
        %v1195 = vadd.f32 0.0, %v1194
        %v1196 = vpop.f32.mrf.mxu0
        %v1197 = vpop.f32.mrf.mxu0
        %v1198 = vadd.f32 0.0, %v1197
        %v1199 = vpop.f32.mrf.mxu0
        %1200 = vmatprep.mubr.bf16.mxu0 0
        %1201 = vmatmul.mubr.bf16.gmra.mxu0 %v1075
        %v1202 = vpop.f32.mrf.mxu0
        %v1203 = vadd.f32 0.0, %v1202
        %v1204 = vpop.f32.mrf.mxu0
        %v1205 = vpop.f32.mrf.mxu0
        %v1206 = vadd.f32 0.0, %v1205
        %v1207 = vpop.f32.mrf.mxu0
        %1208 = vmatprep.mubr.bf16.mxu0 0
        %1209 = vmatmul.mubr.bf16.gmra.mxu0 %v1076
        %v1210 = vpop.f32.mrf.mxu0
        %v1211 = vadd.f32 0.0, %v1210
        %v1212 = vpop.f32.mrf.mxu0
        %v1213 = vpop.f32.mrf.mxu0
        %v1214 = vadd.f32 0.0, %v1213
        %v1215 = vpop.f32.mrf.mxu0
        %1216 = vmatprep.mubr.bf16.mxu0 0
        %1217 = vmatmul.mubr.bf16.gmra.mxu0 %v1077
        %v1218 = vpop.f32.mrf.mxu0
        %v1219 = vadd.f32 0.0, %v1218
        %v1220 = vpop.f32.mrf.mxu0
        %v1221 = vpop.f32.mrf.mxu0
        %v1222 = vadd.f32 0.0, %v1221
        %v1223 = vpop.f32.mrf.mxu0
        %1224 = vmatprep.mubr.bf16.mxu0 0
        %1225 = vmatmul.mubr.bf16.gmra.mxu0 %v1078
        %v1226 = vpop.f32.mrf.mxu0
        %v1227 = vadd.f32 0.0, %v1226
        %v1228 = vpop.f32.mrf.mxu0
        %v1229 = vpop.f32.mrf.mxu0
        %v1230 = vadd.f32 0.0, %v1229
        %v1231 = vpop.f32.mrf.mxu0
        %1232 = vmatprep.mubr.bf16.mxu0 0
        %1233 = vmatmul.mubr.bf16.gmra.mxu0 %v1079
        %v1234 = vpop.f32.mrf.mxu0
        %v1235 = vadd.f32 0.0, %v1234
        %v1236 = vpop.f32.mrf.mxu0
        %v1237 = vpop.f32.mrf.mxu0
        %v1238 = vadd.f32 0.0, %v1237
        %v1239 = vpop.f32.mrf.mxu0
        %1240 = vdwg.mxu0
        %v1241 = vadd.f32 %v1056, %v1179
        %v1242 = vadd.f32 %v1057, %v1182
        %v1243 = vadd.f32 %v1058, %v1187
        %v1244 = vadd.f32 %v1059, %v1190
        %v1245 = vadd.f32 %v1060, %v1195
        %v1246 = vadd.f32 %v1061, %v1198
        %v1247 = vadd.f32 %v1062, %v1203
        %v1248 = vadd.f32 %v1063, %v1206
        %v1249 = vadd.f32 %v1064, %v1211
        %v1250 = vadd.f32 %v1065, %v1214
        %v1251 = vadd.f32 %v1066, %v1219
        %v1252 = vadd.f32 %v1067, %v1222
        %v1253 = vadd.f32 %v1068, %v1227
        %v1254 = vadd.f32 %v1069, %v1230
        %v1255 = vadd.f32 %v1070, %v1235
        %v1256 = vadd.f32 %v1071, %v1238
        %vm1257 = vcmask 261120
        %1258 = vst.msk [vmem:[#allocation4] sm:$0xff] %vm1257, %v1241
        %1259 = vst.msk [vmem:[#allocation4 + $0x8] sm:$0xff] %vm1257, %v1242
        %1260 = vst.msk [vmem:[#allocation4 + $0x10] sm:$0xff] %vm1257, %v1243
        %1261 = vst.msk [vmem:[#allocation4 + $0x18] sm:$0xff] %vm1257, %v1244
        %1262 = vst.msk [vmem:[#allocation4 + $0x20] sm:$0xff] %vm1257, %v1245
        %1263 = vst.msk [vmem:[#allocation4 + $0x28] sm:$0xff] %vm1257, %v1246
        %1264 = vst.msk [vmem:[#allocation4 + $0x30] sm:$0xff] %vm1257, %v1247
        %1265 = vst.msk [vmem:[#allocation4 + $0x38] sm:$0xff] %vm1257, %v1248
        %1266 = vst.msk [vmem:[#allocation4 + $0x40] sm:$0xff] %vm1257, %v1249
        %1267 = vst.msk [vmem:[#allocation4 + $0x48] sm:$0xff] %vm1257, %v1250
        %1268 = vst.msk [vmem:[#allocation4 + $0x50] sm:$0xff] %vm1257, %v1251
        %1269 = vst.msk [vmem:[#allocation4 + $0x58] sm:$0xff] %vm1257, %v1252
        %1270 = vst.msk [vmem:[#allocation4 + $0x60] sm:$0xff] %vm1257, %v1253
        %1271 = vst.msk [vmem:[#allocation4 + $0x68] sm:$0xff] %vm1257, %v1254
        %1272 = vst.msk [vmem:[#allocation4 + $0x70] sm:$0xff] %vm1257, %v1255
        %1273 = vst.msk [vmem:[#allocation4 + $0x78] sm:$0xff] %vm1257, %v1256
        %1274 = vst.msk [vmem:[#allocation2] sm:$0xff] %vm943, %v671
        %1275 = vst.msk [vmem:[#allocation2 + $0x8] sm:$0xff] %vm943, %v672
        %1276 = vst.msk [vmem:[#allocation2 + $0x10] sm:$0xff] %vm943, %v673
        %1277 = vst.msk [vmem:[#allocation2 + $0x18] sm:$0xff] %vm943, %v674
        %1278 = vst.msk [vmem:[#allocation2 + $0x20] sm:$0xff] %vm943, %v675
        %1279 = vst.msk [vmem:[#allocation2 + $0x28] sm:$0xff] %vm943, %v676
        %1280 = vst.msk [vmem:[#allocation2 + $0x30] sm:$0xff] %vm943, %v677
        %1281 = vst.msk [vmem:[#allocation2 + $0x38] sm:$0xff] %vm943, %v678
        %1282 = vst.msk [vmem:[#allocation2 + $0x40] sm:$0xff] %vm943, %v679
        %1283 = vst.msk [vmem:[#allocation2 + $0x48] sm:$0xff] %vm943, %v680
        %1284 = vst.msk [vmem:[#allocation2 + $0x50] sm:$0xff] %vm943, %v681
        %1285 = vst.msk [vmem:[#allocation2 + $0x58] sm:$0xff] %vm943, %v682
        %1286 = vst.msk [vmem:[#allocation2 + $0x60] sm:$0xff] %vm943, %v683
        %1287 = vst.msk [vmem:[#allocation2 + $0x68] sm:$0xff] %vm943, %v684
        %1288 = vst.msk [vmem:[#allocation2 + $0x70] sm:$0xff] %vm943, %v685
        %1289 = vst.msk [vmem:[#allocation2 + $0x78] sm:$0xff] %vm943, %v686
        %p1290 = scmp.eq.s32.totalorder %s21, 1
        // Predicated region
        $region83: #{gat_layer_pallas.3} parent=73 // pred_check
          %p1291 = pneg %p1290
        $region84: #{gat_layer_pallas.3} parent=73 // pred_check_branch
          %1293 = sbr.rel (%p1291) target = $region86
        $region85: #{gat_layer_pallas.3} parent=73 // pred_region
          %v1294 = vld [vmem:[#allocation3] sm:$0xff]
          %v1295 = vld [vmem:[#allocation3 + $0x8] sm:$0xff]
          %v1296 = vld [vmem:[#allocation3 + $0x10] sm:$0xff]
          %v1297 = vld [vmem:[#allocation3 + $0x18] sm:$0xff]
          %v1298 = vld [vmem:[#allocation3 + $0x20] sm:$0xff]
          %v1299 = vld [vmem:[#allocation3 + $0x28] sm:$0xff]
          %v1300 = vld [vmem:[#allocation3 + $0x30] sm:$0xff]
          %v1301 = vld [vmem:[#allocation3 + $0x38] sm:$0xff]
          %v1302 = vld [vmem:[#allocation3 + $0x40] sm:$0xff]
          %v1303 = vld [vmem:[#allocation3 + $0x48] sm:$0xff]
          %v1304 = vld [vmem:[#allocation3 + $0x50] sm:$0xff]
          %v1305 = vld [vmem:[#allocation3 + $0x58] sm:$0xff]
          %v1306 = vld [vmem:[#allocation3 + $0x60] sm:$0xff]
          %v1307 = vld [vmem:[#allocation3 + $0x68] sm:$0xff]
          %v1308 = vld [vmem:[#allocation3 + $0x70] sm:$0xff]
          %v1309 = vld [vmem:[#allocation3 + $0x78] sm:$0xff]
          %v1310 = vrcp.pop %v1294
          %v1311 = vrcp.pop %v1295
          %v1312 = vrcp.pop %v1296
          %v1313 = vrcp.pop %v1297
          %v1314 = vrcp.pop %v1298
          %v1315 = vrcp.pop %v1299
          %v1316 = vrcp.pop %v1300
          %v1317 = vrcp.pop %v1301
          %v1318 = vrcp.pop %v1302
          %v1319 = vrcp.pop %v1303
          %v1320 = vrcp.pop %v1304
          %v1321 = vrcp.pop %v1305
          %v1322 = vrcp.pop %v1306
          %v1323 = vrcp.pop %v1307
          %v1324 = vrcp.pop %v1308
          %v1325 = vrcp.pop %v1309
          %v1326 = vld [vmem:[#allocation4] sm:$0xff]
          %v1327 = vld [vmem:[#allocation4 + $0x8] sm:$0xff]
          %v1328 = vld [vmem:[#allocation4 + $0x10] sm:$0xff]
          %v1329 = vld [vmem:[#allocation4 + $0x18] sm:$0xff]
          %v1330 = vld [vmem:[#allocation4 + $0x20] sm:$0xff]
          %v1331 = vld [vmem:[#allocation4 + $0x28] sm:$0xff]
          %v1332 = vld [vmem:[#allocation4 + $0x30] sm:$0xff]
          %v1333 = vld [vmem:[#allocation4 + $0x38] sm:$0xff]
          %v1334 = vld [vmem:[#allocation4 + $0x40] sm:$0xff]
          %v1335 = vld [vmem:[#allocation4 + $0x48] sm:$0xff]
          %v1336 = vld [vmem:[#allocation4 + $0x50] sm:$0xff]
          %v1337 = vld [vmem:[#allocation4 + $0x58] sm:$0xff]
          %v1338 = vld [vmem:[#allocation4 + $0x60] sm:$0xff]
          %v1339 = vld [vmem:[#allocation4 + $0x68] sm:$0xff]
          %v1340 = vld [vmem:[#allocation4 + $0x70] sm:$0xff]
          %v1341 = vld [vmem:[#allocation4 + $0x78] sm:$0xff]
          %1343 = vset.pattern.permute.xlu0 0
          %1344 = vperm.xlu0 %1343, %v1310
          %v1345 = vpop.permute.xlu0 %1344
          %1348 = vset.pattern.permute.xlu0 0
          %1349 = vperm.xlu0 %1348, %v1311
          %v1350 = vpop.permute.xlu0 %1349
          %1353 = vset.pattern.permute.xlu0 0
          %1354 = vperm.xlu0 %1353, %v1312
          %v1355 = vpop.permute.xlu0 %1354
          %1358 = vset.pattern.permute.xlu0 0
          %1359 = vperm.xlu0 %1358, %v1313
          %v1360 = vpop.permute.xlu0 %1359
          %1363 = vset.pattern.permute.xlu0 0
          %1364 = vperm.xlu0 %1363, %v1314
          %v1365 = vpop.permute.xlu0 %1364
          %1368 = vset.pattern.permute.xlu0 0
          %1369 = vperm.xlu0 %1368, %v1315
          %v1370 = vpop.permute.xlu0 %1369
          %1373 = vset.pattern.permute.xlu0 0
          %1374 = vperm.xlu0 %1373, %v1316
          %v1375 = vpop.permute.xlu0 %1374
          %1378 = vset.pattern.permute.xlu0 0
          %1379 = vperm.xlu0 %1378, %v1317
          %v1380 = vpop.permute.xlu0 %1379
          %1383 = vset.pattern.permute.xlu0 0
          %1384 = vperm.xlu0 %1383, %v1318
          %v1385 = vpop.permute.xlu0 %1384
          %1388 = vset.pattern.permute.xlu0 0
          %1389 = vperm.xlu0 %1388, %v1319
          %v1390 = vpop.permute.xlu0 %1389
          %1393 = vset.pattern.permute.xlu0 0
          %1394 = vperm.xlu0 %1393, %v1320
          %v1395 = vpop.permute.xlu0 %1394
          %1398 = vset.pattern.permute.xlu0 0
          %1399 = vperm.xlu0 %1398, %v1321
          %v1400 = vpop.permute.xlu0 %1399
          %1403 = vset.pattern.permute.xlu0 0
          %1404 = vperm.xlu0 %1403, %v1322
          %v1405 = vpop.permute.xlu0 %1404
          %1408 = vset.pattern.permute.xlu0 0
          %1409 = vperm.xlu0 %1408, %v1323
          %v1410 = vpop.permute.xlu0 %1409
          %1413 = vset.pattern.permute.xlu0 0
          %1414 = vperm.xlu0 %1413, %v1324
          %v1415 = vpop.permute.xlu0 %1414
          %1418 = vset.pattern.permute.xlu0 0
          %1419 = vperm.xlu0 %1418, %v1325
          %v1420 = vpop.permute.xlu0 %1419
          %v1422 = vmul.f32 %v1326, %v1345
          %v1423 = vmul.f32 %v1327, %v1350
          %v1424 = vmul.f32 %v1328, %v1355
          %v1425 = vmul.f32 %v1329, %v1360
          %v1426 = vmul.f32 %v1330, %v1365
          %v1427 = vmul.f32 %v1331, %v1370
          %v1428 = vmul.f32 %v1332, %v1375
          %v1429 = vmul.f32 %v1333, %v1380
          %v1430 = vmul.f32 %v1334, %v1385
          %v1431 = vmul.f32 %v1335, %v1390
          %v1432 = vmul.f32 %v1336, %v1395
          %v1433 = vmul.f32 %v1337, %v1400
          %v1434 = vmul.f32 %v1338, %v1405
          %v1435 = vmul.f32 %v1339, %v1410
          %v1436 = vmul.f32 %v1340, %v1415
          %v1437 = vmul.f32 %v1341, %v1420
          %v1438 = vld [vmem:[%s4] sm:$0x1]
          %v1440 = vlaneseq
          %v1441 = vshrl.u32 %v1440, 7
          %v1442 = vsub.s32 0, %v1441
          %v1443 = vrot.slane %v1438, %v1442
          %v1445 = vadd.f32 %v1422, %v1443
          %v1446 = vadd.f32 %v1423, %v1443
          %v1447 = vadd.f32 %v1424, %v1443
          %v1448 = vadd.f32 %v1425, %v1443
          %v1449 = vadd.f32 %v1426, %v1443
          %v1450 = vadd.f32 %v1427, %v1443
          %v1451 = vadd.f32 %v1428, %v1443
          %v1452 = vadd.f32 %v1429, %v1443
          %v1453 = vadd.f32 %v1430, %v1443
          %v1454 = vadd.f32 %v1431, %v1443
          %v1455 = vadd.f32 %v1432, %v1443
          %v1456 = vadd.f32 %v1433, %v1443
          %v1457 = vadd.f32 %v1434, %v1443
          %v1458 = vadd.f32 %v1435, %v1443
          %v1459 = vadd.f32 %v1436, %v1443
          %v1460 = vadd.f32 %v1437, %v1443
          %v1461 = vmax.f32 %v1445, 0.0
          %v1462 = vmax.f32 %v1446, 0.0
          %v1463 = vmax.f32 %v1447, 0.0
          %v1464 = vmax.f32 %v1448, 0.0
          %v1465 = vmax.f32 %v1449, 0.0
          %v1466 = vmax.f32 %v1450, 0.0
          %v1467 = vmax.f32 %v1451, 0.0
          %v1468 = vmax.f32 %v1452, 0.0
          %v1469 = vmax.f32 %v1453, 0.0
          %v1470 = vmax.f32 %v1454, 0.0
          %v1471 = vmax.f32 %v1455, 0.0
          %v1472 = vmax.f32 %v1456, 0.0
          %v1473 = vmax.f32 %v1457, 0.0
          %v1474 = vmax.f32 %v1458, 0.0
          %v1475 = vmax.f32 %v1459, 0.0
          %v1476 = vmax.f32 %v1460, 0.0
          %1477 = vst.msk [vmem:[%s347] sm:$0xff] %vm1257, %v1461
          %1478 = vst.msk [vmem:[%s347 + $0x8] sm:$0xff] %vm1257, %v1462
          %1479 = vst.msk [vmem:[%s347 + $0x10] sm:$0xff] %vm1257, %v1463
          %1480 = vst.msk [vmem:[%s347 + $0x18] sm:$0xff] %vm1257, %v1464
          %1481 = vst.msk [vmem:[%s347 + $0x20] sm:$0xff] %vm1257, %v1465
          %1482 = vst.msk [vmem:[%s347 + $0x28] sm:$0xff] %vm1257, %v1466
          %1483 = vst.msk [vmem:[%s347 + $0x30] sm:$0xff] %vm1257, %v1467
          %1484 = vst.msk [vmem:[%s347 + $0x38] sm:$0xff] %vm1257, %v1468
          %1485 = vst.msk [vmem:[%s347 + $0x40] sm:$0xff] %vm1257, %v1469
          %1486 = vst.msk [vmem:[%s347 + $0x48] sm:$0xff] %vm1257, %v1470
          %1487 = vst.msk [vmem:[%s347 + $0x50] sm:$0xff] %vm1257, %v1471
          %1488 = vst.msk [vmem:[%s347 + $0x58] sm:$0xff] %vm1257, %v1472
          %1489 = vst.msk [vmem:[%s347 + $0x60] sm:$0xff] %vm1257, %v1473
          %1490 = vst.msk [vmem:[%s347 + $0x68] sm:$0xff] %vm1257, %v1474
          %1491 = vst.msk [vmem:[%s347 + $0x70] sm:$0xff] %vm1257, %v1475
          %1492 = vst.msk [vmem:[%s347 + $0x78] sm:$0xff] %vm1257, %v1476
        $region86: #{gat_layer_pallas.3} parent=73 // pred_fallthru
          _
        %s1493 = smul.u32 16, %s20
        %p1494 = scmp.lt.s32.totalorder %s1493, 31
        %s1495 = scalar_select %p1494, %s1493, 31
        %s1496 = smul.addr %s1495, 8
        %s1497 = scalar_lea.vmem %s5, %s1496
        // Predicated region
        $region87: #{gat_layer_pallas.3} parent=73 // pred_check
          %p1498 = pneg %p173
        $region88: #{gat_layer_pallas.3} parent=73 // pred_check_branch
          %1500 = sbr.rel (%p1498) target = $region90
        $region89: #{gat_layer_pallas.3} parent=73 // pred_region
          %s1501 = smul.u32 16, %s20
        $region90: #{gat_layer_pallas.3} parent=73 // pred_fallthru
          _
      $region74: #{gat_layer_pallas.3} parent=5 // pred_fallthru
        _
      %p1502 = scmp.le.s32.totalorder 2, %s11
      // Predicated region
      $region91: #{gat_layer_pallas.3} parent=5 // pred_check
        %p1503 = pneg %p1502
      $region92: #{gat_layer_pallas.3} parent=5 // pred_check_branch
        %1505 = sbr.rel (%p1503) target = $region94
      $region93: #{gat_layer_pallas.3} parent=5 // pred_region
        %s1506 = ssub.s32 %s11, 2
        // Predicated region
        $region95: #{gat_layer_pallas.3} parent=93 // pred_check
          %p1507 = pneg %p179
        $region96: #{gat_layer_pallas.3} parent=93 // pred_check_branch
          %1509 = sbr.rel (%p1507) target = $region98
        $region97: #{gat_layer_pallas.3} parent=93 // pred_region
          %s1510 = smul.u32 16, %s22
          %p1511 = scmp.lt.s32.totalorder %s1510, 31
          %s1512 = scalar_select %p1511, %s1510, 31
          %s1513 = smul.addr %s1512, 8
          %s1514 = scalar_lea.vmem %s5, %s1513
        $region98: #{gat_layer_pallas.3} parent=93 // pred_fallthru
          _
      $region94: #{gat_layer_pallas.3} parent=5 // pred_fallthru
        _
    $region6: #{gat_layer_pallas.3} parent=1 // loop_footer
      %s15 = sadd.s32 1, %s11
    $region7: #{gat_layer_pallas.3} parent=1 // loop_footer_branch
      %10 = sbr.rel target = $region3
    $region8: #{gat_layer_pallas.3} parent=1 // loop_exit
      _

</llo_original>
